<compile_context>
chip_gen: v6e
topology: v6e:2x2x1
jax: 0.10.0
libtpu: 0.0.40
codegen_flags: <defaults>
</compile_context>

<pallas_src>
import math

import jax
import jax.numpy as jnp
from jax.experimental import pallas as pl
from jax.experimental.pallas import tpu as pltpu


def _layernorm(h, w, b, eps=1e-5):
    mu = jnp.mean(h, axis=-1, keepdims=True)
    var = jnp.mean((h - mu) ** 2, axis=-1, keepdims=True)
    return (h - mu) * jax.lax.rsqrt(var + eps) * w + b


def _gelu_tanh(a):
    # GELU(approximate='tanh'), exactly as PyTorch defines it.
    return 0.5 * a * (1.0 + jnp.tanh(0.7978845608028654 * (a + 0.044715 * a * a * a)))


def _pick_q_chunk(T, target=256):
    """Largest divisor of T that is <= target (bounds the (H,TQ,T) score block)."""
    if T <= target:
        return T
    for c in range(target, 0, -1):
        if T % c == 0:
            return c
    return T


def make_block_kernel(n_head, q_chunk):
    H = n_head
    TQ = q_chunk

    def block_kernel(
        x_ref,
        ln1w_ref, ln1b_ref,
        wqkv_ref, bqkv_ref,
        wpa_ref, bpa_ref,
        ln2w_ref, ln2b_ref,
        wfc_ref, bfc_ref,
        wpm_ref, bpm_ref,
        o_ref,
    ):
        x = x_ref[0]                                   # (T, C) f32
        T, C = x.shape
        D = C // H
        bf16 = jnp.bfloat16

        # ---- ln_1 + fused QKV projection (scale already folded into Q) ----
        h = _layernorm(x, ln1w_ref[...], ln1b_ref[...]).astype(bf16)       # (T, C)
        qkv = (jnp.dot(h, wqkv_ref[...], preferred_element_type=jnp.float32)
               + bqkv_ref[...]).astype(bf16)                               # (T, 3C)

        # Per-head views: (T, C) -> (H, T, D). Lane-dim split + leading-dim
        # transpose; pure layout plumbing, factor-H cheaper than the old
        # broadcast-LHS batched projections.
        def heads(z):
            return jnp.transpose(z.reshape(T, H, D), (1, 0, 2))            # (H, T, D)

        qh = heads(qkv[:, :C])
        kh = heads(qkv[:, C:2 * C])
        vh = heads(qkv[:, 2 * C:])

        # Single (1,TQ,T) iota pair; jnp.where broadcasts it over H.
        col = jax.lax.broadcasted_iota(jnp.int32, (1, TQ, T), 2)
        local_row = jax.lax.broadcasted_iota(jnp.int32, (1, TQ, T), 1)

        # ---- per-query-chunk attention + out-proj + residual + MLP ----
        for ci in range(T // TQ):
            q0 = ci * TQ
            q_c = qh[:, q0:q0 + TQ, :]                                     # (H,TQ,D)

            s = jnp.einsum("htd,hsd->hts", q_c, kh,
                           preferred_element_type=jnp.float32)             # (H,TQ,T)
            s = jnp.where(col <= (local_row + q0), s, -1e30)

            m = jnp.max(s, axis=-1, keepdims=True)                         # (H,TQ,1)
            p = jnp.exp(s - m)
            l = jnp.sum(p, axis=-1, keepdims=True)
            p16 = p.astype(bf16)                                           # drop f32 probs

            ctx = jnp.einsum("hts,hsd->htd", p16, vh,
                             preferred_element_type=jnp.float32)           # (H,TQ,D)
            ctx = (ctx * pl.reciprocal(l, approx=True)).astype(bf16)

            # Re-merge heads (TQ, C) and apply the fused output projection.
            y_c = jnp.transpose(ctx, (1, 0, 2)).reshape(TQ, C)             # bf16
            y_c = (jnp.dot(y_c, wpa_ref[...],
                           preferred_element_type=jnp.float32)
                   + bpa_ref[...])                                         # (TQ,C) f32

            x1 = x[q0:q0 + TQ, :] + y_c                                    # residual 1

            h2 = _layernorm(x1, ln2w_ref[...], ln2b_ref[...]).astype(bf16)
            a = (jnp.dot(h2, wfc_ref[...],
                         preferred_element_type=jnp.float32)
                 + bfc_ref[...])                                           # (TQ,4C)
            g = _gelu_tanh(a).astype(bf16)
            mlp_out = (jnp.dot(g, wpm_ref[...],
                               preferred_element_type=jnp.float32)
                       + bpm_ref[...])                                     # (TQ,C)

            o_ref[0, q0:q0 + TQ, :] = x1 + mlp_out                         # residual 2

    return block_kernel


def _prep_params(params, n_head):
    """Cast weights to bf16; fold 1/sqrt(D) into the Q third of the fused QKV."""
    C = params["w_attn"].shape[0]
    D = C // n_head
    scale = 1.0 / math.sqrt(D)
    bf16 = jnp.bfloat16

    scale_cols = jnp.concatenate(
        [jnp.full((C,), scale, jnp.float32), jnp.ones((2 * C,), jnp.float32)])
    w_qkv = (params["w_attn"] * scale_cols[None, :]).astype(bf16)           # (C, 3C)
    b_qkv = (params["b_attn"] * scale_cols[None, :]).astype(jnp.float32)    # (1, 3C)

    return [
        params["ln1_w"], params["ln1_b"],
        w_qkv, b_qkv,
        params["w_proj_attn"].astype(bf16), params["b_proj_attn"],
        params["ln2_w"], params["ln2_b"],
        params["w_fc"].astype(bf16), params["b_fc"],
        params["w_proj_mlp"].astype(bf16), params["b_proj_mlp"],
    ]


def gpt2_block(x, params, n_head):
    B, T, C = x.shape
    H = n_head
    TQ = _pick_q_chunk(T)
    param_list = _prep_params(params, n_head)

    x_spec = pl.BlockSpec((1, T, C), lambda b: (b, 0, 0))

    def _const_spec(p):
        nd = p.ndim
        return pl.BlockSpec(p.shape, lambda b, nd=nd: (0,) * nd)

    param_specs = [_const_spec(p) for p in param_list]

    # VMEM budget: weights (double-buffered), x/o blocks (double-buffered),
    # sequence-wide activations (h, qkv f32+bf16, per-head q/k/v bf16) and one
    # chunk's attention + MLP intermediates, with a 25% margin.
    param_bytes = sum(int(p.size) * p.dtype.itemsize for p in param_list)
    io_bytes = 2 * 2 * T * C * 4
    inter_bytes = (
        30 * T * C                 # h (f32+bf16), qkv (f32+bf16), qh/kh/vh bf16
        + 10 * H * TQ * T          # scores f32 + exp f32 + probs bf16 (one chunk)
        + 60 * TQ * C              # ctx, y, x1, h2, MLP activations (one chunk)
    )
    est = 2 * param_bytes + io_bytes + int(1.25 * inter_bytes)

    try:
        vmem_cap = int(pltpu.get_tpu_info().vmem_capacity_bytes)
    except Exception:
        vmem_cap = 128 << 20
    ceiling = (vmem_cap * 3) // 4          # ~48 MiB on v7x, ~96 MiB on v5e/v6e
    vmem_limit = int(min(max(est, 32 << 20), ceiling))

    return pl.pallas_call(
        make_block_kernel(n_head, TQ),
        out_shape=jax.ShapeDtypeStruct((B, T, C), jnp.float32),
        grid_spec=pltpu.PrefetchScalarGridSpec(
            num_scalar_prefetch=0,
            grid=(B,),
            in_specs=[x_spec] + param_specs,
            out_specs=x_spec,
        ),
        compiler_params=pltpu.CompilerParams(
            dimension_semantics=("parallel",),
            vmem_limit_bytes=vmem_limit,
        ),
    )(x, *param_list)


def gpt2_block_ref(x, params, n_head):
    """Pure-JAX f32 reference mirroring the PyTorch Block forward."""
    B, T, C = x.shape
    D = C // n_head

    def ln(h, w, b):
        mu = jnp.mean(h, axis=-1, keepdims=True)
        var = jnp.mean((h - mu) ** 2, axis=-1, keepdims=True)
        return (h - mu) / jnp.sqrt(var + 1e-5) * w[0] + b[0]

    h = ln(x, params["ln1_w"], params["ln1_b"])
    qkv = h @ params["w_attn"] + params["b_attn"][0]
    q, k, v = jnp.split(qkv, 3, axis=-1)
    q = q.reshape(B, T, n_head, D).transpose(0, 2, 1, 3)
    k = k.reshape(B, T, n_head, D).transpose(0, 2, 1, 3)
    v = v.reshape(B, T, n_head, D).transpose(0, 2, 1, 3)
    s = jnp.einsum("bhtd,bhsd->bhts", q, k) / math.sqrt(D)
    causal = jnp.tril(jnp.ones((T, T), dtype=bool))
    s = jnp.where(causal[None, None], s, -1e30)
    p = jax.nn.softmax(s, axis=-1)
    y = jnp.einsum("bhts,bhsd->bhtd", p, v)
    y = y.transpose(0, 2, 1, 3).reshape(B, T, C)
    y = y @ params["w_proj_attn"] + params["b_proj_attn"][0]
    x1 = x + y
    h2 = ln(x1, params["ln2_w"], params["ln2_b"])
    a = h2 @ params["w_fc"] + params["b_fc"][0]
    g = 0.5 * a * (1.0 + jnp.tanh(0.7978845608028654 * (a + 0.044715 * a ** 3)))
    m = g @ params["w_proj_mlp"] + params["b_proj_mlp"][0]
    return x1 + m


def init_params(key, n_embd):
    C = n_embd
    ks = jax.random.split(key, 8)
    std = 0.02
    return {
        "ln1_w": jnp.ones((1, C), jnp.float32),
        "ln1_b": jnp.zeros((1, C), jnp.float32),
        "w_attn": std * jax.random.normal(ks[0], (C, 3 * C), jnp.float32),
        "b_attn": std * jax.random.normal(ks[1], (1, 3 * C), jnp.float32),
        "w_proj_attn": std * jax.random.normal(ks[2], (C, C), jnp.float32),
        "b_proj_attn": std * jax.random.normal(ks[3], (1, C), jnp.float32),
        "ln2_w": jnp.ones((1, C), jnp.float32),
        "ln2_b": jnp.zeros((1, C), jnp.float32),
        "w_fc": std * jax.random.normal(ks[4], (C, 4 * C), jnp.float32),
        "b_fc": std * jax.random.normal(ks[5], (1, 4 * C), jnp.float32),
        "w_proj_mlp": std * jax.random.normal(ks[6], (4 * C, C), jnp.float32),
        "b_proj_mlp": std * jax.random.normal(ks[7], (1, C), jnp.float32),
    }


if __name__ == "__main__":
    # NOTE: kept tiny for the correctness check; for benchmarking use C (and T)
    # multiples of 128 so the output stores are lane-dense.
    B, T, C, n_head = 2, 8, 32, 4

    key = jax.random.PRNGKey(0)
    k_x, k_p = jax.random.split(key)
    x = jax.random.normal(k_x, (B, T, C), jnp.float32)
    params = init_params(k_p, C)

    out = gpt2_block(x, params, n_head)
    out = jax.block_until_ready(out)

    ref = gpt2_block_ref(x, params, n_head)
    assert out.shape == (B, T, C)
    max_err = jnp.max(jnp.abs(out - ref))
    # bf16 matmul operands + approx reciprocal -> looser tolerance than pure f32.
    assert jnp.allclose(out, ref, atol=2e-2, rtol=2e-2), f"max abs err {max_err}"

    print("KERNEL_OK")
</pallas_src>

<mosaic_0001>
module attributes {stable_mosaic.version = 11 : i64} {
  func.func @block_kernel(%arg0: i32, %arg1: memref<1x8x32xf32, #tpu.memory_space<vmem>>, %arg2: memref<1x32xf32, #tpu.memory_space<vmem>>, %arg3: memref<1x32xf32, #tpu.memory_space<vmem>>, %arg4: memref<32x96xbf16, #tpu.memory_space<vmem>>, %arg5: memref<1x96xf32, #tpu.memory_space<vmem>>, %arg6: memref<32x32xbf16, #tpu.memory_space<vmem>>, %arg7: memref<1x32xf32, #tpu.memory_space<vmem>>, %arg8: memref<1x32xf32, #tpu.memory_space<vmem>>, %arg9: memref<1x32xf32, #tpu.memory_space<vmem>>, %arg10: memref<32x128xbf16, #tpu.memory_space<vmem>>, %arg11: memref<1x128xf32, #tpu.memory_space<vmem>>, %arg12: memref<128x32xbf16, #tpu.memory_space<vmem>>, %arg13: memref<1x32xf32, #tpu.memory_space<vmem>>, %arg14: memref<1x8x32xf32, #tpu.memory_space<vmem>>) attributes {dimension_semantics = [#tpu.dimension_semantics<parallel>], iteration_bounds = array<i64: 2>, scalar_prefetch = 0 : i64, scratch_operands = 0 : i64, tpu.core_type = #tpu.core_type<tc>, window_params = [{transform_indices = @transform_0, window_bounds = array<i64: 1, 8, 32>}, {pipeline_mode = #tpu.pipeline_mode<synchronous>, transform_indices = @transform_1, window_bounds = array<i64: 1, 32>}, {pipeline_mode = #tpu.pipeline_mode<synchronous>, transform_indices = @transform_2, window_bounds = array<i64: 1, 32>}, {pipeline_mode = #tpu.pipeline_mode<synchronous>, transform_indices = @transform_3, window_bounds = array<i64: 32, 96>}, {pipeline_mode = #tpu.pipeline_mode<synchronous>, transform_indices = @transform_4, window_bounds = array<i64: 1, 96>}, {pipeline_mode = #tpu.pipeline_mode<synchronous>, transform_indices = @transform_5, window_bounds = array<i64: 32, 32>}, {pipeline_mode = #tpu.pipeline_mode<synchronous>, transform_indices = @transform_6, window_bounds = array<i64: 1, 32>}, {pipeline_mode = #tpu.pipeline_mode<synchronous>, transform_indices = @transform_7, window_bounds = array<i64: 1, 32>}, {pipeline_mode = #tpu.pipeline_mode<synchronous>, transform_indices = @transform_8, window_bounds = array<i64: 1, 32>}, {pipeline_mode = #tpu.pipeline_mode<synchronous>, transform_indices = @transform_9, window_bounds = array<i64: 32, 128>}, {pipeline_mode = #tpu.pipeline_mode<synchronous>, transform_indices = @transform_10, window_bounds = array<i64: 1, 128>}, {pipeline_mode = #tpu.pipeline_mode<synchronous>, transform_indices = @transform_11, window_bounds = array<i64: 128, 32>}, {pipeline_mode = #tpu.pipeline_mode<synchronous>, transform_indices = @transform_12, window_bounds = array<i64: 1, 32>}, {transform_indices = @transform_13, window_bounds = array<i64: 1, 8, 32>}]} {
    %c0 = arith.constant 0 : index
    %c0_0 = arith.constant 0 : index
    %c0_1 = arith.constant 0 : index
    %0 = vector.load %arg1[%c0, %c0_0, %c0_1] : memref<1x8x32xf32, #tpu.memory_space<vmem>>, vector<1x8x32xf32>
    %1 = vector.shape_cast %0 : vector<1x8x32xf32> to vector<8x32xf32>
    %c0_2 = arith.constant 0 : index
    %c0_3 = arith.constant 0 : index
    %2 = vector.load %arg2[%c0_2, %c0_3] : memref<1x32xf32, #tpu.memory_space<vmem>>, vector<1x32xf32>
    %c0_4 = arith.constant 0 : index
    %c0_5 = arith.constant 0 : index
    %3 = vector.load %arg3[%c0_4, %c0_5] : memref<1x32xf32, #tpu.memory_space<vmem>>, vector<1x32xf32>
    %cst = arith.constant dense<0.000000e+00> : vector<8xf32>
    %4 = vector.multi_reduction <add>, %1, %cst [1] : vector<8x32xf32> to vector<8xf32>
    %5 = vector.shape_cast %4 : vector<8xf32> to vector<8x1xf32>
    %cst_6 = arith.constant 3.200000e+01 : f32
    %6 = vector.broadcast %cst_6 : f32 to vector<8x1xf32>
    %7 = arith.divf %5, %6 : vector<8x1xf32>
    %8 = vector.broadcast %7 : vector<8x1xf32> to vector<8x32xf32>
    %9 = arith.subf %1, %8 : vector<8x32xf32>
    %10 = arith.mulf %9, %9 : vector<8x32xf32>
    %cst_7 = arith.constant dense<0.000000e+00> : vector<8xf32>
    %11 = vector.multi_reduction <add>, %10, %cst_7 [1] : vector<8x32xf32> to vector<8xf32>
    %12 = vector.shape_cast %11 : vector<8xf32> to vector<8x1xf32>
    %cst_8 = arith.constant 3.200000e+01 : f32
    %13 = vector.broadcast %cst_8 : f32 to vector<8x1xf32>
    %14 = arith.divf %12, %13 : vector<8x1xf32>
    %15 = vector.broadcast %7 : vector<8x1xf32> to vector<8x32xf32>
    %16 = arith.subf %1, %15 : vector<8x32xf32>
    %cst_9 = arith.constant 9.99999974E-6 : f32
    %17 = vector.broadcast %cst_9 : f32 to vector<8x1xf32>
    %18 = arith.addf %14, %17 : vector<8x1xf32>
    %19 = math.rsqrt %18 : vector<8x1xf32>
    %20 = vector.broadcast %19 : vector<8x1xf32> to vector<8x32xf32>
    %21 = arith.mulf %16, %20 : vector<8x32xf32>
    %22 = vector.broadcast %2 : vector<1x32xf32> to vector<8x32xf32>
    %23 = arith.mulf %21, %22 : vector<8x32xf32>
    %24 = vector.broadcast %3 : vector<1x32xf32> to vector<8x32xf32>
    %25 = arith.addf %23, %24 : vector<8x32xf32>
    %26 = arith.truncf %25 : vector<8x32xf32> to vector<8x32xbf16>
    %c0_10 = arith.constant 0 : index
    %c0_11 = arith.constant 0 : index
    %27 = vector.load %arg4[%c0_10, %c0_11] : memref<32x96xbf16, #tpu.memory_space<vmem>>, vector<32x96xbf16>
    %cst_12 = arith.constant dense<0.000000e+00> : vector<8x96xf32>
    %28 = tpu.matmul %26, %27, %cst_12 {dimension_numbers = #tpu.dot_dimension_numbers<[1], [0], [0], [1], [0, 0, 1, 1], [], []>} : vector<8x32xbf16>, vector<32x96xbf16>, vector<8x96xf32> -> vector<8x96xf32>
    %c0_13 = arith.constant 0 : index
    %c0_14 = arith.constant 0 : index
    %29 = vector.load %arg5[%c0_13, %c0_14] : memref<1x96xf32, #tpu.memory_space<vmem>>, vector<1x96xf32>
    %30 = vector.broadcast %29 : vector<1x96xf32> to vector<8x96xf32>
    %31 = arith.addf %28, %30 : vector<8x96xf32>
    %32 = arith.truncf %31 : vector<8x96xf32> to vector<8x96xbf16>
    %33 = vector.extract_strided_slice %32 {offsets = [0, 0], sizes = [8, 32], strides = [1, 1]} : vector<8x96xbf16> to vector<8x32xbf16>
    %34 = vector.shape_cast %33 : vector<8x32xbf16> to vector<8x4x8xbf16>
    %35 = tpu.transpose %34, [1, 0, 2] : vector<8x4x8xbf16> -> vector<4x8x8xbf16>
    %36 = vector.extract_strided_slice %32 {offsets = [0, 32], sizes = [8, 32], strides = [1, 1]} : vector<8x96xbf16> to vector<8x32xbf16>
    %37 = vector.shape_cast %36 : vector<8x32xbf16> to vector<8x4x8xbf16>
    %38 = tpu.transpose %37, [1, 0, 2] : vector<8x4x8xbf16> -> vector<4x8x8xbf16>
    %39 = vector.extract_strided_slice %32 {offsets = [0, 64], sizes = [8, 32], strides = [1, 1]} : vector<8x96xbf16> to vector<8x32xbf16>
    %40 = vector.shape_cast %39 : vector<8x32xbf16> to vector<8x4x8xbf16>
    %41 = tpu.transpose %40, [1, 0, 2] : vector<8x4x8xbf16> -> vector<4x8x8xbf16>
    %42 = tpu.iota {dimensions = array<i32: 2>} : vector<1x8x8xi32>
    %43 = tpu.iota {dimensions = array<i32: 1>} : vector<1x8x8xi32>
    "tpu.trace_start"() <{level = 10 : i32, message = "htd,hsd->hts"}> : () -> ()
    %cst_15 = arith.constant dense<0.000000e+00> : vector<4x8x8xf32>
    %44 = tpu.matmul %35, %38, %cst_15 {dimension_numbers = #tpu.dot_dimension_numbers<[2], [2], [1], [1], [0, 0, 0, 1, 1, 1], [0], [0]>} : vector<4x8x8xbf16>, vector<4x8x8xbf16>, vector<4x8x8xf32> -> vector<4x8x8xf32>
    "tpu.trace_stop"() : () -> ()
    %c0_i32 = arith.constant 0 : i32
    %45 = vector.broadcast %c0_i32 : i32 to vector<1x8x8xi32>
    %46 = arith.addi %43, %45 : vector<1x8x8xi32>
    %47 = arith.cmpi sle, %42, %46 : vector<1x8x8xi32>
    %cst_16 = arith.constant -1.000000e+30 : f32
    %48 = vector.shape_cast %47 : vector<1x8x8xi1> to vector<1x8x8xi1>
    %49 = vector.broadcast %48 : vector<1x8x8xi1> to vector<4x8x8xi1>
    %50 = vector.broadcast %cst_16 : f32 to vector<4x8x8xf32>
    %51 = arith.select %49, %44, %50 : vector<4x8x8xi1>, vector<4x8x8xf32>
    %cst_17 = arith.constant dense<0xFF800000> : vector<4x8xf32>
    %52 = vector.multi_reduction <maximumf>, %51, %cst_17 [2] : vector<4x8x8xf32> to vector<4x8xf32>
    %53 = vector.shape_cast %52 : vector<4x8xf32> to vector<4x8x1xf32>
    %54 = vector.broadcast %53 : vector<4x8x1xf32> to vector<4x8x8xf32>
    %55 = arith.subf %51, %54 : vector<4x8x8xf32>
    %56 = math.exp %55 : vector<4x8x8xf32>
    %cst_18 = arith.constant dense<0.000000e+00> : vector<4x8xf32>
    %57 = vector.multi_reduction <add>, %56, %cst_18 [2] : vector<4x8x8xf32> to vector<4x8xf32>
    %58 = vector.shape_cast %57 : vector<4x8xf32> to vector<4x8x1xf32>
    %59 = arith.truncf %56 : vector<4x8x8xf32> to vector<4x8x8xbf16>
    "tpu.trace_start"() <{level = 10 : i32, message = "hts,hsd->htd"}> : () -> ()
    %cst_19 = arith.constant dense<0.000000e+00> : vector<4x8x8xf32>
    %60 = tpu.matmul %59, %41, %cst_19 {dimension_numbers = #tpu.dot_dimension_numbers<[2], [1], [1], [2], [0, 0, 0, 1, 1, 2], [0], [0]>} : vector<4x8x8xbf16>, vector<4x8x8xbf16>, vector<4x8x8xf32> -> vector<4x8x8xf32>
    "tpu.trace_stop"() : () -> ()
    %61 = tpu.reciprocal %58 {approx = true} : vector<4x8x1xf32> -> vector<4x8x1xf32>
    %62 = vector.broadcast %61 : vector<4x8x1xf32> to vector<4x8x8xf32>
    %63 = arith.mulf %60, %62 : vector<4x8x8xf32>
    %64 = arith.truncf %63 : vector<4x8x8xf32> to vector<4x8x8xbf16>
    %65 = tpu.transpose %64, [1, 0, 2] : vector<4x8x8xbf16> -> vector<8x4x8xbf16>
    %66 = vector.shape_cast %65 : vector<8x4x8xbf16> to vector<8x32xbf16>
    %c0_20 = arith.constant 0 : index
    %c0_21 = arith.constant 0 : index
    %67 = vector.load %arg6[%c0_20, %c0_21] : memref<32x32xbf16, #tpu.memory_space<vmem>>, vector<32x32xbf16>
    %cst_22 = arith.constant dense<0.000000e+00> : vector<8x32xf32>
    %68 = tpu.matmul %66, %67, %cst_22 {dimension_numbers = #tpu.dot_dimension_numbers<[1], [0], [0], [1], [0, 0, 1, 1], [], []>} : vector<8x32xbf16>, vector<32x32xbf16>, vector<8x32xf32> -> vector<8x32xf32>
    %c0_23 = arith.constant 0 : index
    %c0_24 = arith.constant 0 : index
    %69 = vector.load %arg7[%c0_23, %c0_24] : memref<1x32xf32, #tpu.memory_space<vmem>>, vector<1x32xf32>
    %70 = vector.broadcast %69 : vector<1x32xf32> to vector<8x32xf32>
    %71 = arith.addf %68, %70 : vector<8x32xf32>
    %72 = arith.addf %1, %71 : vector<8x32xf32>
    %c0_25 = arith.constant 0 : index
    %c0_26 = arith.constant 0 : index
    %73 = vector.load %arg8[%c0_25, %c0_26] : memref<1x32xf32, #tpu.memory_space<vmem>>, vector<1x32xf32>
    %c0_27 = arith.constant 0 : index
    %c0_28 = arith.constant 0 : index
    %74 = vector.load %arg9[%c0_27, %c0_28] : memref<1x32xf32, #tpu.memory_space<vmem>>, vector<1x32xf32>
    %cst_29 = arith.constant dense<0.000000e+00> : vector<8xf32>
    %75 = vector.multi_reduction <add>, %72, %cst_29 [1] : vector<8x32xf32> to vector<8xf32>
    %76 = vector.shape_cast %75 : vector<8xf32> to vector<8x1xf32>
    %cst_30 = arith.constant 3.200000e+01 : f32
    %77 = vector.broadcast %cst_30 : f32 to vector<8x1xf32>
    %78 = arith.divf %76, %77 : vector<8x1xf32>
    %79 = vector.broadcast %78 : vector<8x1xf32> to vector<8x32xf32>
    %80 = arith.subf %72, %79 : vector<8x32xf32>
    %81 = arith.mulf %80, %80 : vector<8x32xf32>
    %cst_31 = arith.constant dense<0.000000e+00> : vector<8xf32>
    %82 = vector.multi_reduction <add>, %81, %cst_31 [1] : vector<8x32xf32> to vector<8xf32>
    %83 = vector.shape_cast %82 : vector<8xf32> to vector<8x1xf32>
    %cst_32 = arith.constant 3.200000e+01 : f32
    %84 = vector.broadcast %cst_32 : f32 to vector<8x1xf32>
    %85 = arith.divf %83, %84 : vector<8x1xf32>
    %86 = vector.broadcast %78 : vector<8x1xf32> to vector<8x32xf32>
    %87 = arith.subf %72, %86 : vector<8x32xf32>
    %cst_33 = arith.constant 9.99999974E-6 : f32
    %88 = vector.broadcast %cst_33 : f32 to vector<8x1xf32>
    %89 = arith.addf %85, %88 : vector<8x1xf32>
    %90 = math.rsqrt %89 : vector<8x1xf32>
    %91 = vector.broadcast %90 : vector<8x1xf32> to vector<8x32xf32>
    %92 = arith.mulf %87, %91 : vector<8x32xf32>
    %93 = vector.broadcast %73 : vector<1x32xf32> to vector<8x32xf32>
    %94 = arith.mulf %92, %93 : vector<8x32xf32>
    %95 = vector.broadcast %74 : vector<1x32xf32> to vector<8x32xf32>
    %96 = arith.addf %94, %95 : vector<8x32xf32>
    %97 = arith.truncf %96 : vector<8x32xf32> to vector<8x32xbf16>
    %c0_34 = arith.constant 0 : index
    %c0_35 = arith.constant 0 : index
    %98 = vector.load %arg10[%c0_34, %c0_35] : memref<32x128xbf16, #tpu.memory_space<vmem>>, vector<32x128xbf16>
    %cst_36 = arith.constant dense<0.000000e+00> : vector<8x128xf32>
    %99 = tpu.matmul %97, %98, %cst_36 {dimension_numbers = #tpu.dot_dimension_numbers<[1], [0], [0], [1], [0, 0, 1, 1], [], []>} : vector<8x32xbf16>, vector<32x128xbf16>, vector<8x128xf32> -> vector<8x128xf32>
    %c0_37 = arith.constant 0 : index
    %c0_38 = arith.constant 0 : index
    %100 = vector.load %arg11[%c0_37, %c0_38] : memref<1x128xf32, #tpu.memory_space<vmem>>, vector<1x128xf32>
    %101 = vector.broadcast %100 : vector<1x128xf32> to vector<8x128xf32>
    %102 = arith.addf %99, %101 : vector<8x128xf32>
    %cst_39 = arith.constant 5.000000e-01 : f32
    %103 = vector.broadcast %cst_39 : f32 to vector<8x128xf32>
    %104 = arith.mulf %103, %102 : vector<8x128xf32>
    %cst_40 = arith.constant 4.471500e-02 : f32
    %105 = vector.broadcast %cst_40 : f32 to vector<8x128xf32>
    %106 = arith.mulf %105, %102 : vector<8x128xf32>
    %107 = arith.mulf %106, %102 : vector<8x128xf32>
    %108 = arith.mulf %107, %102 : vector<8x128xf32>
    %109 = arith.addf %102, %108 : vector<8x128xf32>
    %cst_41 = arith.constant 0.797884583 : f32
    %110 = vector.broadcast %cst_41 : f32 to vector<8x128xf32>
    %111 = arith.mulf %110, %109 : vector<8x128xf32>
    %112 = math.tanh %111 : vector<8x128xf32>
    %cst_42 = arith.constant 1.000000e+00 : f32
    %113 = vector.broadcast %cst_42 : f32 to vector<8x128xf32>
    %114 = arith.addf %113, %112 : vector<8x128xf32>
    %115 = arith.mulf %104, %114 : vector<8x128xf32>
    %116 = arith.truncf %115 : vector<8x128xf32> to vector<8x128xbf16>
    %c0_43 = arith.constant 0 : index
    %c0_44 = arith.constant 0 : index
    %117 = vector.load %arg12[%c0_43, %c0_44] : memref<128x32xbf16, #tpu.memory_space<vmem>>, vector<128x32xbf16>
    %cst_45 = arith.constant dense<0.000000e+00> : vector<8x32xf32>
    %118 = tpu.matmul %116, %117, %cst_45 {dimension_numbers = #tpu.dot_dimension_numbers<[1], [0], [0], [1], [0, 0, 1, 1], [], []>} : vector<8x128xbf16>, vector<128x32xbf16>, vector<8x32xf32> -> vector<8x32xf32>
    %c0_46 = arith.constant 0 : index
    %c0_47 = arith.constant 0 : index
    %119 = vector.load %arg13[%c0_46, %c0_47] : memref<1x32xf32, #tpu.memory_space<vmem>>, vector<1x32xf32>
    %120 = vector.broadcast %119 : vector<1x32xf32> to vector<8x32xf32>
    %121 = arith.addf %118, %120 : vector<8x32xf32>
    %122 = arith.addf %72, %121 : vector<8x32xf32>
    %c0_48 = arith.constant 0 : index
    %c0_49 = arith.constant 0 : index
    %c0_50 = arith.constant 0 : index
    %123 = vector.load %arg14[%c0_48, %c0_49, %c0_50] : memref<1x8x32xf32, #tpu.memory_space<vmem>>, vector<1x8x32xf32>
    %124 = vector.shape_cast %123 : vector<1x8x32xf32> to vector<8x32xf32>
    %125 = vector.shape_cast %122 : vector<8x32xf32> to vector<1x8x32xf32>
    tpu.vector_store %arg14[%c0_48, %c0_49, %c0_50], %125 {strides = array<i32>} : memref<1x8x32xf32, #tpu.memory_space<vmem>>, vector<1x8x32xf32>,
    return
  }
  func.func @transform_0(%arg0: i32) -> (i32, i32, i32) {
    %c0_i32 = arith.constant 0 : i32
    %c0_i32_0 = arith.constant 0 : i32
    %c0_i32_1 = arith.constant 0 : i32
    return %arg0, %c0_i32, %c0_i32_0 : i32, i32, i32
  }
  func.func @transform_1(%arg0: i32) -> (i32, i32) {
    %c0_i32 = arith.constant 0 : i32
    %c0_i32_0 = arith.constant 0 : i32
    %c0_i32_1 = arith.constant 0 : i32
    return %c0_i32, %c0_i32_0 : i32, i32
  }
  func.func @transform_2(%arg0: i32) -> (i32, i32) {
    %c0_i32 = arith.constant 0 : i32
    %c0_i32_0 = arith.constant 0 : i32
    %c0_i32_1 = arith.constant 0 : i32
    return %c0_i32, %c0_i32_0 : i32, i32
  }
  func.func @transform_3(%arg0: i32) -> (i32, i32) {
    %c0_i32 = arith.constant 0 : i32
    %c0_i32_0 = arith.constant 0 : i32
    %c0_i32_1 = arith.constant 0 : i32
    return %c0_i32, %c0_i32_0 : i32, i32
  }
  func.func @transform_4(%arg0: i32) -> (i32, i32) {
    %c0_i32 = arith.constant 0 : i32
    %c0_i32_0 = arith.constant 0 : i32
    %c0_i32_1 = arith.constant 0 : i32
    return %c0_i32, %c0_i32_0 : i32, i32
  }
  func.func @transform_5(%arg0: i32) -> (i32, i32) {
    %c0_i32 = arith.constant 0 : i32
    %c0_i32_0 = arith.constant 0 : i32
    %c0_i32_1 = arith.constant 0 : i32
    return %c0_i32, %c0_i32_0 : i32, i32
  }
  func.func @transform_6(%arg0: i32) -> (i32, i32) {
    %c0_i32 = arith.constant 0 : i32
    %c0_i32_0 = arith.constant 0 : i32
    %c0_i32_1 = arith.constant 0 : i32
    return %c0_i32, %c0_i32_0 : i32, i32
  }
  func.func @transform_7(%arg0: i32) -> (i32, i32) {
    %c0_i32 = arith.constant 0 : i32
    %c0_i32_0 = arith.constant 0 : i32
    %c0_i32_1 = arith.constant 0 : i32
    return %c0_i32, %c0_i32_0 : i32, i32
  }
  func.func @transform_8(%arg0: i32) -> (i32, i32) {
    %c0_i32 = arith.constant 0 : i32
    %c0_i32_0 = arith.constant 0 : i32
    %c0_i32_1 = arith.constant 0 : i32
    return %c0_i32, %c0_i32_0 : i32, i32
  }
  func.func @transform_9(%arg0: i32) -> (i32, i32) {
    %c0_i32 = arith.constant 0 : i32
    %c0_i32_0 = arith.constant 0 : i32
    %c0_i32_1 = arith.constant 0 : i32
    return %c0_i32, %c0_i32_0 : i32, i32
  }
  func.func @transform_10(%arg0: i32) -> (i32, i32) {
    %c0_i32 = arith.constant 0 : i32
    %c0_i32_0 = arith.constant 0 : i32
    %c0_i32_1 = arith.constant 0 : i32
    return %c0_i32, %c0_i32_0 : i32, i32
  }
  func.func @transform_11(%arg0: i32) -> (i32, i32) {
    %c0_i32 = arith.constant 0 : i32
    %c0_i32_0 = arith.constant 0 : i32
    %c0_i32_1 = arith.constant 0 : i32
    return %c0_i32, %c0_i32_0 : i32, i32
  }
  func.func @transform_12(%arg0: i32) -> (i32, i32) {
    %c0_i32 = arith.constant 0 : i32
    %c0_i32_0 = arith.constant 0 : i32
    %c0_i32_1 = arith.constant 0 : i32
    return %c0_i32, %c0_i32_0 : i32, i32
  }
  func.func @transform_13(%arg0: i32) -> (i32, i32, i32) {
    %c0_i32 = arith.constant 0 : i32
    %c0_i32_0 = arith.constant 0 : i32
    %c0_i32_1 = arith.constant 0 : i32
    return %arg0, %c0_i32, %c0_i32_0 : i32, i32, i32
  }
}

</mosaic_0001>

<llo_original>
// kernel: tpu_custom_call.1
$region0: #{tpu_custom_call.1}
  #allocation0 [shape = 'u32[]', space=smem, size = 0x4, offset = 0x4, fixed_abs, tag = 'smem constant byte address 0x4 - core index']
  #allocation1 [shape = 'u32[144,128]{1,0:T(1,128)}', space=vmem, size = 0x12000, scoped, tag = 'internal scratch']
  %s0 = inlined_call_operand.vmem [shape: f32[2,8,32], index: 0, kind: input, shape index: {}]
  %s1 = inlined_call_operand.vmem [shape: f32[1,32], index: 1, kind: input, shape index: {}]
  %s2 = inlined_call_operand.vmem [shape: f32[1,32], index: 2, kind: input, shape index: {}]
  %s3 = inlined_call_operand.vmem [shape: bf16[32,96], index: 3, kind: input, shape index: {}]
  %s4 = inlined_call_operand.vmem [shape: f32[1,96], index: 4, kind: input, shape index: {}]
  %s5 = inlined_call_operand.vmem [shape: bf16[32,32], index: 5, kind: input, shape index: {}]
  %s6 = inlined_call_operand.vmem [shape: f32[1,32], index: 6, kind: input, shape index: {}]
  %s7 = inlined_call_operand.vmem [shape: f32[1,32], index: 7, kind: input, shape index: {}]
  %s8 = inlined_call_operand.vmem [shape: f32[1,32], index: 8, kind: input, shape index: {}]
  %s9 = inlined_call_operand.vmem [shape: bf16[32,128], index: 9, kind: input, shape index: {}]
  %s10 = inlined_call_operand.vmem [shape: f32[1,128], index: 10, kind: input, shape index: {}]
  %s11 = inlined_call_operand.vmem [shape: bf16[128,32], index: 11, kind: input, shape index: {}]
  %s12 = inlined_call_operand.vmem [shape: f32[1,32], index: 12, kind: input, shape index: {}]
  %s13 = inlined_call_operand.hbm [shape: f32[2,8,32], index: 13, kind: output, shape index: {}]
  %s14 = sld [smem:[#allocation0]]
  $region85: #{tpu_custom_call.1} parent=0
    _
  %s16 = ssub.s32 1, %s14
  %s17 = scalar_select 0, %s16, %s14
  $region1: #{tpu_custom_call.1} parent=0
    #allocation2 [shape = 'u8[8192]{0}', space=vmem, size = 0x2000, scoped, tag = 'output window, operand 0']
    #allocation3 [shape = 's32[2]{0}', space=sflag, size = 0x8, scoped, tag = 'scoped memory for tpu_custom_call.1']
    %18 = vsyncpa [#allocation3], 0
    %s19 = scalar_lea.sflag [#allocation3], 1
    %20 = vsyncpa %s19, 0
    loop: start=0, step=1, limit=4
    $region2: #{tpu_custom_call.1} parent=1 // loop_pre_header
      _
    $region3: #{tpu_custom_call.1} parent=1 // loop_header
      %s22 = sphi 0, %s26
      %p23 = scmp.ge.s32.totalorder %s22, 4
      %s32 = sphi 0, %s34
      %s35 = sphi 0, %s32
      %s36 = sphi 0, %s35
      %s52 = sphi 0, %s36
      %s56 = sphi 0, %s56
      %s58 = sphi 0, %s56
      %s59 = sphi 0, %s58
      %s73 = sphi 0, %s59
      %s77 = sphi 0, %s77
      %s79 = sphi 0, %s77
      %s80 = sphi 0, %s79
      %s94 = sphi 0, %s80
      %s98 = sphi 0, %s98
      %s100 = sphi 0, %s98
      %s101 = sphi 0, %s100
      %s115 = sphi 0, %s101
      %s119 = sphi 0, %s119
      %s121 = sphi 0, %s119
      %s122 = sphi 0, %s121
      %s136 = sphi 0, %s122
      %s140 = sphi 0, %s140
      %s142 = sphi 0, %s140
      %s143 = sphi 0, %s142
      %s157 = sphi 0, %s143
      %s161 = sphi 0, %s161
      %s163 = sphi 0, %s161
      %s164 = sphi 0, %s163
      %s178 = sphi 0, %s164
      %s182 = sphi 0, %s182
      %s184 = sphi 0, %s182
      %s185 = sphi 0, %s184
      %s199 = sphi 0, %s185
      %s203 = sphi 0, %s203
      %s205 = sphi 0, %s203
      %s206 = sphi 0, %s205
      %s220 = sphi 0, %s206
      %s224 = sphi 0, %s224
      %s226 = sphi 0, %s224
      %s227 = sphi 0, %s226
      %s241 = sphi 0, %s227
      %s245 = sphi 0, %s245
      %s247 = sphi 0, %s245
      %s248 = sphi 0, %s247
      %s262 = sphi 0, %s248
      %s266 = sphi 0, %s266
      %s268 = sphi 0, %s266
      %s269 = sphi 0, %s268
      %s283 = sphi 0, %s269
      %s287 = sphi 0, %s287
      %s289 = sphi 0, %s287
      %s290 = sphi 0, %s289
      %s304 = sphi 0, %s290
      %s310 = sphi 0, %s312
      %s313 = sphi 0, %s310
      %s314 = sphi 0, %s313
      %s330 = sphi 0, %s314
    $region4: #{tpu_custom_call.1} parent=1 // loop_header_branch
      %25 = sbr.rel (%p23) target = $region8
    $region5: #{tpu_custom_call.1} parent=1 // loop_body
      %s27 = ssub.s32 %s22, 1
      %s28 = ssub.s32 %s22, 2
      %s29 = sadd.s32 %s22, 1
      %s30 = ssub.s32 %s22, %s29
      %p31 = scmp.eq.s32.totalorder %s30, 0
      %s33 = sadd.s32 %s32, 1
      %s34 = scalar_select %p31, %s32, %s33
      %p37 = pneg %p31
      %p38 = scmp.eq.s32.totalorder %s22, 1
      %p39 = por %p37, %p38
      %p40 = scmp.ne.s32.totalorder %s32, %s35
      %p41 = scmp.eq.s32.totalorder %s22, 0
      %p42 = por %p40, %p41
      %p43 = scmp.ne.s32.totalorder %s32, %s35
      %p44 = scmp.eq.s32.totalorder %s27, 1
      %p45 = por %p43, %p44
      %p46 = scmp.ne.s32.totalorder %s35, %s36
      %p47 = scmp.eq.s32.totalorder %s27, 0
      %p48 = por %p46, %p47
      %p49 = scmp.ne.s32.totalorder %s35, %s36
      %p50 = scmp.eq.s32.totalorder %s28, 1
      %p51 = por %p49, %p50
      %p53 = scmp.ne.s32.totalorder %s36, %s52
      %p54 = scmp.eq.s32.totalorder %s28, 0
      %p55 = por %p53, %p54
      %s57 = sadd.s32 %s56, 1
      %p60 = scmp.eq.s32.totalorder %s22, 1
      %p61 = scmp.ne.s32.totalorder %s56, %s58
      %p62 = scmp.eq.s32.totalorder %s22, 0
      %p63 = por %p61, %p62
      %p64 = scmp.ne.s32.totalorder %s56, %s58
      %p65 = scmp.eq.s32.totalorder %s27, 1
      %p66 = por %p64, %p65
      %p67 = scmp.ne.s32.totalorder %s58, %s59
      %p68 = scmp.eq.s32.totalorder %s27, 0
      %p69 = por %p67, %p68
      %p70 = scmp.ne.s32.totalorder %s58, %s59
      %p71 = scmp.eq.s32.totalorder %s28, 1
      %p72 = por %p70, %p71
      %p74 = scmp.ne.s32.totalorder %s59, %s73
      %p75 = scmp.eq.s32.totalorder %s28, 0
      %p76 = por %p74, %p75
      %s78 = sadd.s32 %s77, 1
      %p81 = scmp.eq.s32.totalorder %s22, 1
      %p82 = scmp.ne.s32.totalorder %s77, %s79
      %p83 = scmp.eq.s32.totalorder %s22, 0
      %p84 = por %p82, %p83
      %p85 = scmp.ne.s32.totalorder %s77, %s79
      %p86 = scmp.eq.s32.totalorder %s27, 1
      %p87 = por %p85, %p86
      %p88 = scmp.ne.s32.totalorder %s79, %s80
      %p89 = scmp.eq.s32.totalorder %s27, 0
      %p90 = por %p88, %p89
      %p91 = scmp.ne.s32.totalorder %s79, %s80
      %p92 = scmp.eq.s32.totalorder %s28, 1
      %p93 = por %p91, %p92
      %p95 = scmp.ne.s32.totalorder %s80, %s94
      %p96 = scmp.eq.s32.totalorder %s28, 0
      %p97 = por %p95, %p96
      %s99 = sadd.s32 %s98, 1
      %p102 = scmp.eq.s32.totalorder %s22, 1
      %p103 = scmp.ne.s32.totalorder %s98, %s100
      %p104 = scmp.eq.s32.totalorder %s22, 0
      %p105 = por %p103, %p104
      %p106 = scmp.ne.s32.totalorder %s98, %s100
      %p107 = scmp.eq.s32.totalorder %s27, 1
      %p108 = por %p106, %p107
      %p109 = scmp.ne.s32.totalorder %s100, %s101
      %p110 = scmp.eq.s32.totalorder %s27, 0
      %p111 = por %p109, %p110
      %p112 = scmp.ne.s32.totalorder %s100, %s101
      %p113 = scmp.eq.s32.totalorder %s28, 1
      %p114 = por %p112, %p113
      %p116 = scmp.ne.s32.totalorder %s101, %s115
      %p117 = scmp.eq.s32.totalorder %s28, 0
      %p118 = por %p116, %p117
      %s120 = sadd.s32 %s119, 1
      %p123 = scmp.eq.s32.totalorder %s22, 1
      %p124 = scmp.ne.s32.totalorder %s119, %s121
      %p125 = scmp.eq.s32.totalorder %s22, 0
      %p126 = por %p124, %p125
      %p127 = scmp.ne.s32.totalorder %s119, %s121
      %p128 = scmp.eq.s32.totalorder %s27, 1
      %p129 = por %p127, %p128
      %p130 = scmp.ne.s32.totalorder %s121, %s122
      %p131 = scmp.eq.s32.totalorder %s27, 0
      %p132 = por %p130, %p131
      %p133 = scmp.ne.s32.totalorder %s121, %s122
      %p134 = scmp.eq.s32.totalorder %s28, 1
      %p135 = por %p133, %p134
      %p137 = scmp.ne.s32.totalorder %s122, %s136
      %p138 = scmp.eq.s32.totalorder %s28, 0
      %p139 = por %p137, %p138
      %s141 = sadd.s32 %s140, 1
      %p144 = scmp.eq.s32.totalorder %s22, 1
      %p145 = scmp.ne.s32.totalorder %s140, %s142
      %p146 = scmp.eq.s32.totalorder %s22, 0
      %p147 = por %p145, %p146
      %p148 = scmp.ne.s32.totalorder %s140, %s142
      %p149 = scmp.eq.s32.totalorder %s27, 1
      %p150 = por %p148, %p149
      %p151 = scmp.ne.s32.totalorder %s142, %s143
      %p152 = scmp.eq.s32.totalorder %s27, 0
      %p153 = por %p151, %p152
      %p154 = scmp.ne.s32.totalorder %s142, %s143
      %p155 = scmp.eq.s32.totalorder %s28, 1
      %p156 = por %p154, %p155
      %p158 = scmp.ne.s32.totalorder %s143, %s157
      %p159 = scmp.eq.s32.totalorder %s28, 0
      %p160 = por %p158, %p159
      %s162 = sadd.s32 %s161, 1
      %p165 = scmp.eq.s32.totalorder %s22, 1
      %p166 = scmp.ne.s32.totalorder %s161, %s163
      %p167 = scmp.eq.s32.totalorder %s22, 0
      %p168 = por %p166, %p167
      %p169 = scmp.ne.s32.totalorder %s161, %s163
      %p170 = scmp.eq.s32.totalorder %s27, 1
      %p171 = por %p169, %p170
      %p172 = scmp.ne.s32.totalorder %s163, %s164
      %p173 = scmp.eq.s32.totalorder %s27, 0
      %p174 = por %p172, %p173
      %p175 = scmp.ne.s32.totalorder %s163, %s164
      %p176 = scmp.eq.s32.totalorder %s28, 1
      %p177 = por %p175, %p176
      %p179 = scmp.ne.s32.totalorder %s164, %s178
      %p180 = scmp.eq.s32.totalorder %s28, 0
      %p181 = por %p179, %p180
      %s183 = sadd.s32 %s182, 1
      %p186 = scmp.eq.s32.totalorder %s22, 1
      %p187 = scmp.ne.s32.totalorder %s182, %s184
      %p188 = scmp.eq.s32.totalorder %s22, 0
      %p189 = por %p187, %p188
      %p190 = scmp.ne.s32.totalorder %s182, %s184
      %p191 = scmp.eq.s32.totalorder %s27, 1
      %p192 = por %p190, %p191
      %p193 = scmp.ne.s32.totalorder %s184, %s185
      %p194 = scmp.eq.s32.totalorder %s27, 0
      %p195 = por %p193, %p194
      %p196 = scmp.ne.s32.totalorder %s184, %s185
      %p197 = scmp.eq.s32.totalorder %s28, 1
      %p198 = por %p196, %p197
      %p200 = scmp.ne.s32.totalorder %s185, %s199
      %p201 = scmp.eq.s32.totalorder %s28, 0
      %p202 = por %p200, %p201
      %s204 = sadd.s32 %s203, 1
      %p207 = scmp.eq.s32.totalorder %s22, 1
      %p208 = scmp.ne.s32.totalorder %s203, %s205
      %p209 = scmp.eq.s32.totalorder %s22, 0
      %p210 = por %p208, %p209
      %p211 = scmp.ne.s32.totalorder %s203, %s205
      %p212 = scmp.eq.s32.totalorder %s27, 1
      %p213 = por %p211, %p212
      %p214 = scmp.ne.s32.totalorder %s205, %s206
      %p215 = scmp.eq.s32.totalorder %s27, 0
      %p216 = por %p214, %p215
      %p217 = scmp.ne.s32.totalorder %s205, %s206
      %p218 = scmp.eq.s32.totalorder %s28, 1
      %p219 = por %p217, %p218
      %p221 = scmp.ne.s32.totalorder %s206, %s220
      %p222 = scmp.eq.s32.totalorder %s28, 0
      %p223 = por %p221, %p222
      %s225 = sadd.s32 %s224, 1
      %p228 = scmp.eq.s32.totalorder %s22, 1
      %p229 = scmp.ne.s32.totalorder %s224, %s226
      %p230 = scmp.eq.s32.totalorder %s22, 0
      %p231 = por %p229, %p230
      %p232 = scmp.ne.s32.totalorder %s224, %s226
      %p233 = scmp.eq.s32.totalorder %s27, 1
      %p234 = por %p232, %p233
      %p235 = scmp.ne.s32.totalorder %s226, %s227
      %p236 = scmp.eq.s32.totalorder %s27, 0
      %p237 = por %p235, %p236
      %p238 = scmp.ne.s32.totalorder %s226, %s227
      %p239 = scmp.eq.s32.totalorder %s28, 1
      %p240 = por %p238, %p239
      %p242 = scmp.ne.s32.totalorder %s227, %s241
      %p243 = scmp.eq.s32.totalorder %s28, 0
      %p244 = por %p242, %p243
      %s246 = sadd.s32 %s245, 1
      %p249 = scmp.eq.s32.totalorder %s22, 1
      %p250 = scmp.ne.s32.totalorder %s245, %s247
      %p251 = scmp.eq.s32.totalorder %s22, 0
      %p252 = por %p250, %p251
      %p253 = scmp.ne.s32.totalorder %s245, %s247
      %p254 = scmp.eq.s32.totalorder %s27, 1
      %p255 = por %p253, %p254
      %p256 = scmp.ne.s32.totalorder %s247, %s248
      %p257 = scmp.eq.s32.totalorder %s27, 0
      %p258 = por %p256, %p257
      %p259 = scmp.ne.s32.totalorder %s247, %s248
      %p260 = scmp.eq.s32.totalorder %s28, 1
      %p261 = por %p259, %p260
      %p263 = scmp.ne.s32.totalorder %s248, %s262
      %p264 = scmp.eq.s32.totalorder %s28, 0
      %p265 = por %p263, %p264
      %s267 = sadd.s32 %s266, 1
      %p270 = scmp.eq.s32.totalorder %s22, 1
      %p271 = scmp.ne.s32.totalorder %s266, %s268
      %p272 = scmp.eq.s32.totalorder %s22, 0
      %p273 = por %p271, %p272
      %p274 = scmp.ne.s32.totalorder %s266, %s268
      %p275 = scmp.eq.s32.totalorder %s27, 1
      %p276 = por %p274, %p275
      %p277 = scmp.ne.s32.totalorder %s268, %s269
      %p278 = scmp.eq.s32.totalorder %s27, 0
      %p279 = por %p277, %p278
      %p280 = scmp.ne.s32.totalorder %s268, %s269
      %p281 = scmp.eq.s32.totalorder %s28, 1
      %p282 = por %p280, %p281
      %p284 = scmp.ne.s32.totalorder %s269, %s283
      %p285 = scmp.eq.s32.totalorder %s28, 0
      %p286 = por %p284, %p285
      %s288 = sadd.s32 %s287, 1
      %p291 = scmp.eq.s32.totalorder %s22, 1
      %p292 = scmp.ne.s32.totalorder %s287, %s289
      %p293 = scmp.eq.s32.totalorder %s22, 0
      %p294 = por %p292, %p293
      %p295 = scmp.ne.s32.totalorder %s287, %s289
      %p296 = scmp.eq.s32.totalorder %s27, 1
      %p297 = por %p295, %p296
      %p298 = scmp.ne.s32.totalorder %s289, %s290
      %p299 = scmp.eq.s32.totalorder %s27, 0
      %p300 = por %p298, %p299
      %p301 = scmp.ne.s32.totalorder %s289, %s290
      %p302 = scmp.eq.s32.totalorder %s28, 1
      %p303 = por %p301, %p302
      %p305 = scmp.ne.s32.totalorder %s290, %s304
      %p306 = scmp.eq.s32.totalorder %s28, 0
      %p307 = por %p305, %p306
      %s308 = ssub.s32 %s22, %s29
      %p309 = scmp.eq.s32.totalorder %s308, 0
      %s311 = sadd.s32 %s310, 1
      %s312 = scalar_select %p309, %s310, %s311
      %p315 = pneg %p309
      %p316 = scmp.eq.s32.totalorder %s22, 1
      %p317 = por %p315, %p316
      %p318 = scmp.ne.s32.totalorder %s310, %s313
      %p319 = scmp.eq.s32.totalorder %s22, 0
      %p320 = por %p318, %p319
      %p321 = scmp.ne.s32.totalorder %s310, %s313
      %p322 = scmp.eq.s32.totalorder %s27, 1
      %p323 = por %p321, %p322
      %p324 = scmp.ne.s32.totalorder %s313, %s314
      %p325 = scmp.eq.s32.totalorder %s27, 0
      %p326 = por %p324, %p325
      %p327 = scmp.ne.s32.totalorder %s313, %s314
      %p328 = scmp.eq.s32.totalorder %s28, 1
      %p329 = por %p327, %p328
      %p331 = scmp.ne.s32.totalorder %s314, %s330
      %p332 = scmp.eq.s32.totalorder %s28, 0
      %p333 = por %p331, %p332
      %p334 = scmp.le.s32.totalorder 1, %s22
      %p335 = scmp.lt.s32.totalorder %s22, 3
      %p336 = pnand %p334, %p335
      %p337 = pneg %p336
      // Predicated region
      $region9: #{tpu_custom_call.1} parent=5 // pred_check
        _
      $region10: #{tpu_custom_call.1} parent=5 // pred_check_branch
        %339 = sbr.rel (%p336) target = $region12
      $region11: #{tpu_custom_call.1} parent=5 // pred_region
        %s340 = ssub.s32 %s22, 1
        // Predicated region
        $region13: #{tpu_custom_call.1} parent=11 // pred_check
          %p341 = pneg %p69
        $region14: #{tpu_custom_call.1} parent=11 // pred_check_branch
          %343 = sbr.rel (%p341) target = $region16
        $region15: #{tpu_custom_call.1} parent=11 // pred_region
          _
        $region16: #{tpu_custom_call.1} parent=11 // pred_fallthru
          _
        // Predicated region
        $region17: #{tpu_custom_call.1} parent=11 // pred_check
          %p344 = pneg %p90
        $region18: #{tpu_custom_call.1} parent=11 // pred_check_branch
          %346 = sbr.rel (%p344) target = $region20
        $region19: #{tpu_custom_call.1} parent=11 // pred_region
          _
        $region20: #{tpu_custom_call.1} parent=11 // pred_fallthru
          _
        // Predicated region
        $region21: #{tpu_custom_call.1} parent=11 // pred_check
          %p347 = pneg %p111
        $region22: #{tpu_custom_call.1} parent=11 // pred_check_branch
          %349 = sbr.rel (%p347) target = $region24
        $region23: #{tpu_custom_call.1} parent=11 // pred_region
          _
        $region24: #{tpu_custom_call.1} parent=11 // pred_fallthru
          _
        // Predicated region
        $region25: #{tpu_custom_call.1} parent=11 // pred_check
          %p350 = pneg %p132
        $region26: #{tpu_custom_call.1} parent=11 // pred_check_branch
          %352 = sbr.rel (%p350) target = $region28
        $region27: #{tpu_custom_call.1} parent=11 // pred_region
          _
        $region28: #{tpu_custom_call.1} parent=11 // pred_fallthru
          _
        // Predicated region
        $region29: #{tpu_custom_call.1} parent=11 // pred_check
          %p353 = pneg %p153
        $region30: #{tpu_custom_call.1} parent=11 // pred_check_branch
          %355 = sbr.rel (%p353) target = $region32
        $region31: #{tpu_custom_call.1} parent=11 // pred_region
          _
        $region32: #{tpu_custom_call.1} parent=11 // pred_fallthru
          _
        // Predicated region
        $region33: #{tpu_custom_call.1} parent=11 // pred_check
          %p356 = pneg %p174
        $region34: #{tpu_custom_call.1} parent=11 // pred_check_branch
          %358 = sbr.rel (%p356) target = $region36
        $region35: #{tpu_custom_call.1} parent=11 // pred_region
          _
        $region36: #{tpu_custom_call.1} parent=11 // pred_fallthru
          _
        // Predicated region
        $region37: #{tpu_custom_call.1} parent=11 // pred_check
          %p359 = pneg %p195
        $region38: #{tpu_custom_call.1} parent=11 // pred_check_branch
          %361 = sbr.rel (%p359) target = $region40
        $region39: #{tpu_custom_call.1} parent=11 // pred_region
          _
        $region40: #{tpu_custom_call.1} parent=11 // pred_fallthru
          _
        // Predicated region
        $region41: #{tpu_custom_call.1} parent=11 // pred_check
          %p362 = pneg %p216
        $region42: #{tpu_custom_call.1} parent=11 // pred_check_branch
          %364 = sbr.rel (%p362) target = $region44
        $region43: #{tpu_custom_call.1} parent=11 // pred_region
          _
        $region44: #{tpu_custom_call.1} parent=11 // pred_fallthru
          _
        // Predicated region
        $region45: #{tpu_custom_call.1} parent=11 // pred_check
          %p365 = pneg %p237
        $region46: #{tpu_custom_call.1} parent=11 // pred_check_branch
          %367 = sbr.rel (%p365) target = $region48
        $region47: #{tpu_custom_call.1} parent=11 // pred_region
          _
        $region48: #{tpu_custom_call.1} parent=11 // pred_fallthru
          _
        // Predicated region
        $region49: #{tpu_custom_call.1} parent=11 // pred_check
          %p368 = pneg %p258
        $region50: #{tpu_custom_call.1} parent=11 // pred_check_branch
          %370 = sbr.rel (%p368) target = $region52
        $region51: #{tpu_custom_call.1} parent=11 // pred_region
          _
        $region52: #{tpu_custom_call.1} parent=11 // pred_fallthru
          _
        // Predicated region
        $region53: #{tpu_custom_call.1} parent=11 // pred_check
          %p371 = pneg %p279
        $region54: #{tpu_custom_call.1} parent=11 // pred_check_branch
          %373 = sbr.rel (%p371) target = $region56
        $region55: #{tpu_custom_call.1} parent=11 // pred_region
          _
        $region56: #{tpu_custom_call.1} parent=11 // pred_fallthru
          _
        // Predicated region
        $region57: #{tpu_custom_call.1} parent=11 // pred_check
          %p374 = pneg %p300
        $region58: #{tpu_custom_call.1} parent=11 // pred_check_branch
          %376 = sbr.rel (%p374) target = $region60
        $region59: #{tpu_custom_call.1} parent=11 // pred_region
          _
        $region60: #{tpu_custom_call.1} parent=11 // pred_fallthru
          _
      $region12: #{tpu_custom_call.1} parent=5 // pred_fallthru
        _
      %p377 = scmp.lt.s32.totalorder %s22, 2
      // Predicated region
      $region61: #{tpu_custom_call.1} parent=5 // pred_check
        %p378 = pneg %p377
      $region62: #{tpu_custom_call.1} parent=5 // pred_check_branch
        %380 = sbr.rel (%p378) target = $region64
      $region63: #{tpu_custom_call.1} parent=5 // pred_region
        // Predicated region
        $region65: #{tpu_custom_call.1} parent=63 // pred_check
          %p381 = pneg %p42
        $region66: #{tpu_custom_call.1} parent=63 // pred_check_branch
          %383 = sbr.rel (%p381) target = $region68
        $region67: #{tpu_custom_call.1} parent=63 // pred_region
          %p384 = scmp.lt.s32.totalorder %s22, 1
          %s385 = scalar_select %p384, %s22, 1
          %s386 = smul.addr %s385, 8
          %s387 = scalar_lea.vmem %s0, %s386
        $region68: #{tpu_custom_call.1} parent=63 // pred_fallthru
          _
      $region64: #{tpu_custom_call.1} parent=5 // pred_fallthru
        _
      %p388 = scmp.le.s32.totalorder 1, %s22
      %p389 = scmp.lt.s32.totalorder %s22, 3
      %p390 = pnand %p388, %p389
      %p391 = pneg %p390
      // Predicated region
      $region69: #{tpu_custom_call.1} parent=5 // pred_check
        _
      $region70: #{tpu_custom_call.1} parent=5 // pred_check_branch
        %393 = sbr.rel (%p390) target = $region72
      $region71: #{tpu_custom_call.1} parent=5 // pred_region
        %s394 = ssub.s32 %s22, 1
        %p395 = scmp.lt.s32.totalorder %s27, 1
        %s396 = scalar_select %p395, %s27, 1
        %s397 = smul.addr %s396, 8
        %s398 = scalar_lea.vmem %s0, %s397
        %p399 = pneg %p48
        %p400 = pneg %p45
        %p401 = pneg %p69
        %p402 = pneg %p66
        %p403 = pneg %p90
        %p404 = pneg %p87
        %p405 = pneg %p111
        %p406 = pneg %p108
        %p407 = pneg %p132
        %p408 = pneg %p129
        %p409 = pneg %p153
        %p410 = pneg %p150
        %p411 = pneg %p174
        %p412 = pneg %p171
        %p413 = pneg %p195
        %p414 = pneg %p192
        %p415 = pneg %p216
        %p416 = pneg %p213
        %p417 = pneg %p237
        %p418 = pneg %p234
        %p419 = pneg %p258
        %p420 = pneg %p255
        %p421 = pneg %p279
        %p422 = pneg %p276
        %p423 = pneg %p300
        %p424 = pneg %p297
        %p425 = pneg %p326
        %p426 = pneg %p323
        %s427 = sand.u32 %s313, 1
        %s428 = scalar_lea.sflag [#allocation3], %s427
        %s429 = sand.u32 %s313, 1
        %s430 = smul.addr %s429, 8
        %s431 = scalar_lea.vmem [#allocation2], %s430
        %p432 = scmp.lt.s32.totalorder %s27, 1
        %s433 = scalar_select %p432, %s27, 1
        %s434 = smul.addr %s433, 8
        %s435 = scalar_lea.vmem %s0, %s434
        %v437 = vld [vmem:[%s435] sm:$0xff]
        %v438 = vld [vmem:[%s1] sm:$0x1]
        %v439 = vld [vmem:[%s2] sm:$0x1]
        %vm440 = vcmask 261120
        %v441 = vsel %vm440, %v437, 0.0
        %442 = vadd.xlane.f32.xlu0 %v441
        %v443 = vpop.xlane.xlu0 %442
        %v444 = vrcp.pop 32.0
        %v445 = vmul.f32 %v443, %v444
        %v446 = vsub.f32 %v437, %v445
        %v447 = vmul.f32 %v446, %v446
        %v448 = vsel %vm440, %v447, 0.0
        %449 = vadd.xlane.f32.xlu0 %v448
        %v450 = vpop.xlane.xlu0 %449
        %v451 = vmul.f32 %v450, %v444
        %v452 = vadd.f32 %v451, 1e-05
        %v453 = vrsqrt.pop %v452
        %v454 = vmul.f32 %v446, %v453
        %v456 = vlaneseq
        %v457 = vshrl.u32 %v456, 7
        %v458 = vsub.s32 0, %v457
        %v459 = vrot.slane %v438, %v458
        %v461 = vmul.f32 %v454, %v459
        %v463 = vlaneseq
        %v464 = vshrl.u32 %v463, 7
        %v465 = vsub.s32 0, %v464
        %v466 = vrot.slane %v439, %v465
        %v468 = vadd.f32 %v461, %v466
        %v469 = vpack.c.bf16 %v468, %v468
        %v470 = vld [vmem:[%s3] sm:$0xf]
        %v471 = vld [vmem:[%s3 + $0x4] sm:$0xf]
        %v472 = vld [vmem:[%s3 + $0x8] sm:$0xf]
        %v473 = vld [vmem:[%s3 + $0xc] sm:$0xf]
        %v474 = vld [vmem:[%s4] sm:$0x1]
        %v476 = vlaneseq
        %v477 = vshrl.u32 %v476, 7
        %v478 = vsub.s32 0, %v477
        %v479 = vrot.slane %v474, %v478
        %v485 = vunpack.c.l.b16 %v470
        %v486 = vunpack.c.l.b16 %v471
        %v487 = vunpack.c.l.b16 %v472
        %v488 = vunpack.c.l.b16 %v473
        %v489 = vpack.c.b16 %v486, %v485
        %v490 = vpack.c.b16 %v488, %v487
        %v494 = vsel %vm440, %v469, 0
        %496 = vmatprep.subr.bf16.mxu0 0
        %497 = vmatpush1.bf16.msra.mxu0 0
        %498 = vmatprep.subr.bf16.mxu0 0
        %499 = vmatpush1.bf16.msra.mxu0 0
        %500 = vmatprep.subr.bf16.mxu0 0
        %501 = vmatpush1.bf16.msra.mxu0 0
        %502 = vmatprep.subr.bf16.mxu0 0
        %503 = vmatpush1.bf16.msra.mxu0 0
        %504 = vmatprep.subr.bf16.mxu0 0
        %505 = vmatpush1.bf16.msra.mxu0 0
        %506 = vmatprep.subr.bf16.mxu0 0
        %507 = vmatpush1.bf16.msra.mxu0 0
        %508 = vmatprep.subr.bf16.mxu0 0
        %509 = vmatpush1.bf16.msra.mxu0 %v490
        %510 = vmatprep.subr.bf16.mxu0 0
        %511 = vmatpush1.bf16.msra.mxu0 %v489
        %512 = vmatprep.subr.bf16.mxu0 0
        %513 = vmatpush2.bf16.msra.mxu0 0
        %514 = vmatprep.subr.bf16.mxu0 0
        %515 = vmatpush2.bf16.msra.mxu0 0
        %516 = vmatprep.subr.bf16.mxu0 0
        %517 = vmatpush2.bf16.msra.mxu0 0
        %518 = vmatprep.subr.bf16.mxu0 0
        %519 = vmatpush2.bf16.msra.mxu0 0
        %520 = vmatprep.subr.bf16.mxu0 0
        %521 = vmatpush2.bf16.msra.mxu0 0
        %522 = vmatprep.subr.bf16.mxu0 0
        %523 = vmatpush2.bf16.msra.mxu0 0
        %524 = vmatprep.subr.bf16.mxu0 0
        %525 = vmatpush2.bf16.msra.mxu0 0
        %526 = vmatprep.subr.bf16.mxu0 0
        %527 = vmatpush2.bf16.msra.mxu0 0
        %528 = vmatprep.mubr.bf16.mxu0 0
        %529 = vmatmul.mubr.bf16.gmra.mxu0 %v494
        %v530 = vpop.f32.mrf.mxu0
        %v531 = vadd.f32 %v479, %v530
        %v532 = vpop.f32.mrf.mxu0
        %v533 = vpop.f32.mrf.mxu0
        %v534 = vpop.f32.mrf.mxu0
        %535 = vdwg.mxu0
        %v536 = vpack.c.bf16 %v531, %v531
        %538 = vrot.lane.b32.xlu0 %v536, 120
        %v539 = vpop.permute.xlu0 %538
        %540 = vrot.lane.b32.xlu0 %v536, 112
        %v541 = vpop.permute.xlu0 %540
        %542 = vrot.lane.b32.xlu0 %v536, 104
        %v543 = vpop.permute.xlu0 %542
        %v545 = vunpack.c.l.s4 1983009808
        %v546 = vunpack.c.0.s8 %v545
        %v547 = vlaneseq
        %v548 = vshrl.u32 %v547, 7
        %v549 = vsub.s32 %v546, %v548
        %v550 = vrot.slane %v536, %v549
        %v553 = vunpack.c.l.s4 1983009808
        %v554 = vunpack.c.0.s8 %v553
        %v555 = vlaneseq
        %v556 = vshrl.u32 %v555, 7
        %v557 = vsub.s32 %v554, %v556
        %v558 = vrot.slane %v541, %v557
        %v559 = vcombine.low %v550, %v558
        %v560 = vcombine.high %v550, %v558
        %v562 = vunpack.c.l.s4 1934713408
        %v563 = vunpack.c.0.s8 %v562
        %v564 = vlaneseq
        %v565 = vshrl.u32 %v564, 7
        %v566 = vsub.s32 %v563, %v565
        %v567 = vrot.slane %v559, %v566
        %v569 = vunpack.c.l.s4 1934713408
        %v570 = vunpack.c.0.s8 %v569
        %v571 = vlaneseq
        %v572 = vshrl.u32 %v571, 7
        %v573 = vsub.s32 %v570, %v572
        %v574 = vrot.slane %v560, %v573
        %v575 = vcombine.high %v567, 0
        %v576 = vcombine.high %v574, 0
        %v579 = vunpack.c.l.s4 1983009808
        %v580 = vunpack.c.0.s8 %v579
        %v581 = vlaneseq
        %v582 = vshrl.u32 %v581, 7
        %v583 = vsub.s32 %v580, %v582
        %v584 = vrot.slane %v539, %v583
        %v587 = vunpack.c.l.s4 1983009808
        %v588 = vunpack.c.0.s8 %v587
        %v589 = vlaneseq
        %v590 = vshrl.u32 %v589, 7
        %v591 = vsub.s32 %v588, %v590
        %v592 = vrot.slane %v543, %v591
        %v593 = vcombine.low %v584, %v592
        %v594 = vcombine.high %v584, %v592
        %v596 = vunpack.c.l.s4 1934713408
        %v597 = vunpack.c.0.s8 %v596
        %v598 = vlaneseq
        %v599 = vshrl.u32 %v598, 7
        %v600 = vsub.s32 %v597, %v599
        %v601 = vrot.slane %v593, %v600
        %v603 = vunpack.c.l.s4 1934713408
        %v604 = vunpack.c.0.s8 %v603
        %v605 = vlaneseq
        %v606 = vshrl.u32 %v605, 7
        %v607 = vsub.s32 %v604, %v606
        %v608 = vrot.slane %v594, %v607
        %v609 = vcombine.high %v601, 0
        %v610 = vcombine.high %v608, 0
        %v613 = vpack.i.b16 %v601, %v567
        %v615 = vshrl.u32 %v567, 16
        %v616 = vshrl.u32 %v601, 16
        %v617 = vpack.i.b16 %v616, %v615
        %v621 = vpack.i.b16 %v609, %v575
        %v623 = vshrl.u32 %v575, 16
        %v624 = vshrl.u32 %v609, 16
        %v625 = vpack.i.b16 %v624, %v623
        %v629 = vpack.i.b16 %v608, %v574
        %v631 = vshrl.u32 %v574, 16
        %v632 = vshrl.u32 %v608, 16
        %v633 = vpack.i.b16 %v632, %v631
        %v637 = vpack.i.b16 %v610, %v576
        %v639 = vshrl.u32 %v576, 16
        %v640 = vshrl.u32 %v610, 16
        %v641 = vpack.i.b16 %v640, %v639
        %v643 = vcombine.low %v613, %v629
        %v645 = vunpack.c.l.s4 1983009808
        %v646 = vunpack.c.0.s8 %v645
        %v647 = vlaneseq
        %v648 = vshrl.u32 %v647, 7
        %v649 = vsub.s32 %v646, %v648
        %v650 = vrot.slane %v643, %v649
        %v651 = vcombine.low %v621, %v637
        %v653 = vunpack.c.l.s4 1983009808
        %v654 = vunpack.c.0.s8 %v653
        %v655 = vlaneseq
        %v656 = vshrl.u32 %v655, 7
        %v657 = vsub.s32 %v654, %v656
        %v658 = vrot.slane %v651, %v657
        %v659 = vcombine.low %v650, %v658
        %v661 = vunpack.c.l.s4 1934713408
        %v662 = vunpack.c.0.s8 %v661
        %v663 = vlaneseq
        %v664 = vshrl.u32 %v663, 7
        %v665 = vsub.s32 %v662, %v664
        %v666 = vrot.slane %v659, %v665
        %v667 = vcombine.high %v666, 0
        %v668 = vcombine.low %v617, %v633
        %v670 = vunpack.c.l.s4 1983009808
        %v671 = vunpack.c.0.s8 %v670
        %v672 = vlaneseq
        %v673 = vshrl.u32 %v672, 7
        %v674 = vsub.s32 %v671, %v673
        %v675 = vrot.slane %v668, %v674
        %v676 = vcombine.low %v625, %v641
        %v678 = vunpack.c.l.s4 1983009808
        %v679 = vunpack.c.0.s8 %v678
        %v680 = vlaneseq
        %v681 = vshrl.u32 %v680, 7
        %v682 = vsub.s32 %v679, %v681
        %v683 = vrot.slane %v676, %v682
        %v684 = vcombine.low %v675, %v683
        %v686 = vunpack.c.l.s4 1934713408
        %v687 = vunpack.c.0.s8 %v686
        %v688 = vlaneseq
        %v689 = vshrl.u32 %v688, 7
        %v690 = vsub.s32 %v687, %v689
        %v691 = vrot.slane %v684, %v690
        %v692 = vcombine.high %v691, 0
        %v695 = vpack.i.b16 %v691, %v666
        %v696 = vshrl.u32 %v666, 16
        %v697 = vshrl.u32 %v691, 16
        %v698 = vpack.i.b16 %v697, %v696
        %v701 = vpack.i.b16 %v692, %v667
        %v702 = vshrl.u32 %v667, 16
        %v703 = vshrl.u32 %v692, 16
        %v704 = vpack.i.b16 %v703, %v702
        %705 = vrot.lane.b32.xlu0 %v536, 96
        %v706 = vpop.permute.xlu0 %705
        %707 = vrot.lane.b32.xlu0 %v539, 96
        %v708 = vpop.permute.xlu0 %707
        %709 = vrot.lane.b32.xlu0 %v541, 96
        %v710 = vpop.permute.xlu0 %709
        %711 = vrot.lane.b32.xlu0 %v543, 96
        %v712 = vpop.permute.xlu0 %711
        %v715 = vunpack.c.l.s4 1983009808
        %v716 = vunpack.c.0.s8 %v715
        %v717 = vlaneseq
        %v718 = vshrl.u32 %v717, 7
        %v719 = vsub.s32 %v716, %v718
        %v720 = vrot.slane %v706, %v719
        %v723 = vunpack.c.l.s4 1983009808
        %v724 = vunpack.c.0.s8 %v723
        %v725 = vlaneseq
        %v726 = vshrl.u32 %v725, 7
        %v727 = vsub.s32 %v724, %v726
        %v728 = vrot.slane %v710, %v727
        %v729 = vcombine.low %v720, %v728
        %v730 = vcombine.high %v720, %v728
        %v732 = vunpack.c.l.s4 1934713408
        %v733 = vunpack.c.0.s8 %v732
        %v734 = vlaneseq
        %v735 = vshrl.u32 %v734, 7
        %v736 = vsub.s32 %v733, %v735
        %v737 = vrot.slane %v729, %v736
        %v739 = vunpack.c.l.s4 1934713408
        %v740 = vunpack.c.0.s8 %v739
        %v741 = vlaneseq
        %v742 = vshrl.u32 %v741, 7
        %v743 = vsub.s32 %v740, %v742
        %v744 = vrot.slane %v730, %v743
        %v745 = vcombine.high %v737, 0
        %v746 = vcombine.high %v744, 0
        %v749 = vunpack.c.l.s4 1983009808
        %v750 = vunpack.c.0.s8 %v749
        %v751 = vlaneseq
        %v752 = vshrl.u32 %v751, 7
        %v753 = vsub.s32 %v750, %v752
        %v754 = vrot.slane %v708, %v753
        %v757 = vunpack.c.l.s4 1983009808
        %v758 = vunpack.c.0.s8 %v757
        %v759 = vlaneseq
        %v760 = vshrl.u32 %v759, 7
        %v761 = vsub.s32 %v758, %v760
        %v762 = vrot.slane %v712, %v761
        %v763 = vcombine.low %v754, %v762
        %v764 = vcombine.high %v754, %v762
        %v766 = vunpack.c.l.s4 1934713408
        %v767 = vunpack.c.0.s8 %v766
        %v768 = vlaneseq
        %v769 = vshrl.u32 %v768, 7
        %v770 = vsub.s32 %v767, %v769
        %v771 = vrot.slane %v763, %v770
        %v773 = vunpack.c.l.s4 1934713408
        %v774 = vunpack.c.0.s8 %v773
        %v775 = vlaneseq
        %v776 = vshrl.u32 %v775, 7
        %v777 = vsub.s32 %v774, %v776
        %v778 = vrot.slane %v764, %v777
        %v779 = vcombine.high %v771, 0
        %v780 = vcombine.high %v778, 0
        %v783 = vpack.i.b16 %v771, %v737
        %v785 = vshrl.u32 %v737, 16
        %v786 = vshrl.u32 %v771, 16
        %v787 = vpack.i.b16 %v786, %v785
        %v791 = vpack.i.b16 %v779, %v745
        %v793 = vshrl.u32 %v745, 16
        %v794 = vshrl.u32 %v779, 16
        %v795 = vpack.i.b16 %v794, %v793
        %v799 = vpack.i.b16 %v778, %v744
        %v801 = vshrl.u32 %v744, 16
        %v802 = vshrl.u32 %v778, 16
        %v803 = vpack.i.b16 %v802, %v801
        %v807 = vpack.i.b16 %v780, %v746
        %v809 = vshrl.u32 %v746, 16
        %v810 = vshrl.u32 %v780, 16
        %v811 = vpack.i.b16 %v810, %v809
        %v813 = vcombine.low %v783, %v799
        %v815 = vunpack.c.l.s4 1983009808
        %v816 = vunpack.c.0.s8 %v815
        %v817 = vlaneseq
        %v818 = vshrl.u32 %v817, 7
        %v819 = vsub.s32 %v816, %v818
        %v820 = vrot.slane %v813, %v819
        %v821 = vcombine.low %v791, %v807
        %v823 = vunpack.c.l.s4 1983009808
        %v824 = vunpack.c.0.s8 %v823
        %v825 = vlaneseq
        %v826 = vshrl.u32 %v825, 7
        %v827 = vsub.s32 %v824, %v826
        %v828 = vrot.slane %v821, %v827
        %v829 = vcombine.low %v820, %v828
        %v831 = vunpack.c.l.s4 1934713408
        %v832 = vunpack.c.0.s8 %v831
        %v833 = vlaneseq
        %v834 = vshrl.u32 %v833, 7
        %v835 = vsub.s32 %v832, %v834
        %v836 = vrot.slane %v829, %v835
        %v837 = vcombine.high %v836, 0
        %v838 = vcombine.low %v787, %v803
        %v840 = vunpack.c.l.s4 1983009808
        %v841 = vunpack.c.0.s8 %v840
        %v842 = vlaneseq
        %v843 = vshrl.u32 %v842, 7
        %v844 = vsub.s32 %v841, %v843
        %v845 = vrot.slane %v838, %v844
        %v846 = vcombine.low %v795, %v811
        %v848 = vunpack.c.l.s4 1983009808
        %v849 = vunpack.c.0.s8 %v848
        %v850 = vlaneseq
        %v851 = vshrl.u32 %v850, 7
        %v852 = vsub.s32 %v849, %v851
        %v853 = vrot.slane %v846, %v852
        %v854 = vcombine.low %v845, %v853
        %v856 = vunpack.c.l.s4 1934713408
        %v857 = vunpack.c.0.s8 %v856
        %v858 = vlaneseq
        %v859 = vshrl.u32 %v858, 7
        %v860 = vsub.s32 %v857, %v859
        %v861 = vrot.slane %v854, %v860
        %v862 = vcombine.high %v861, 0
        %v865 = vpack.i.b16 %v861, %v836
        %v866 = vshrl.u32 %v836, 16
        %v867 = vshrl.u32 %v861, 16
        %v868 = vpack.i.b16 %v867, %v866
        %v871 = vpack.i.b16 %v862, %v837
        %v872 = vshrl.u32 %v837, 16
        %v873 = vshrl.u32 %v862, 16
        %v874 = vpack.i.b16 %v873, %v872
        %875 = vrot.lane.b32.xlu0 %v536, 64
        %v876 = vpop.permute.xlu0 %875
        %877 = vrot.lane.b32.xlu0 %v539, 64
        %v878 = vpop.permute.xlu0 %877
        %879 = vrot.lane.b32.xlu0 %v541, 64
        %v880 = vpop.permute.xlu0 %879
        %881 = vrot.lane.b32.xlu0 %v543, 64
        %v882 = vpop.permute.xlu0 %881
        %v885 = vunpack.c.l.s4 1983009808
        %v886 = vunpack.c.0.s8 %v885
        %v887 = vlaneseq
        %v888 = vshrl.u32 %v887, 7
        %v889 = vsub.s32 %v886, %v888
        %v890 = vrot.slane %v876, %v889
        %v893 = vunpack.c.l.s4 1983009808
        %v894 = vunpack.c.0.s8 %v893
        %v895 = vlaneseq
        %v896 = vshrl.u32 %v895, 7
        %v897 = vsub.s32 %v894, %v896
        %v898 = vrot.slane %v880, %v897
        %v899 = vcombine.low %v890, %v898
        %v900 = vcombine.high %v890, %v898
        %v902 = vunpack.c.l.s4 1934713408
        %v903 = vunpack.c.0.s8 %v902
        %v904 = vlaneseq
        %v905 = vshrl.u32 %v904, 7
        %v906 = vsub.s32 %v903, %v905
        %v907 = vrot.slane %v899, %v906
        %v909 = vunpack.c.l.s4 1934713408
        %v910 = vunpack.c.0.s8 %v909
        %v911 = vlaneseq
        %v912 = vshrl.u32 %v911, 7
        %v913 = vsub.s32 %v910, %v912
        %v914 = vrot.slane %v900, %v913
        %v915 = vcombine.high %v907, 0
        %v916 = vcombine.high %v914, 0
        %v919 = vunpack.c.l.s4 1983009808
        %v920 = vunpack.c.0.s8 %v919
        %v921 = vlaneseq
        %v922 = vshrl.u32 %v921, 7
        %v923 = vsub.s32 %v920, %v922
        %v924 = vrot.slane %v878, %v923
        %v927 = vunpack.c.l.s4 1983009808
        %v928 = vunpack.c.0.s8 %v927
        %v929 = vlaneseq
        %v930 = vshrl.u32 %v929, 7
        %v931 = vsub.s32 %v928, %v930
        %v932 = vrot.slane %v882, %v931
        %v933 = vcombine.low %v924, %v932
        %v934 = vcombine.high %v924, %v932
        %v936 = vunpack.c.l.s4 1934713408
        %v937 = vunpack.c.0.s8 %v936
        %v938 = vlaneseq
        %v939 = vshrl.u32 %v938, 7
        %v940 = vsub.s32 %v937, %v939
        %v941 = vrot.slane %v933, %v940
        %v943 = vunpack.c.l.s4 1934713408
        %v944 = vunpack.c.0.s8 %v943
        %v945 = vlaneseq
        %v946 = vshrl.u32 %v945, 7
        %v947 = vsub.s32 %v944, %v946
        %v948 = vrot.slane %v934, %v947
        %v949 = vcombine.high %v941, 0
        %v950 = vcombine.high %v948, 0
        %v953 = vpack.i.b16 %v941, %v907
        %v955 = vshrl.u32 %v907, 16
        %v956 = vshrl.u32 %v941, 16
        %v957 = vpack.i.b16 %v956, %v955
        %v961 = vpack.i.b16 %v949, %v915
        %v963 = vshrl.u32 %v915, 16
        %v964 = vshrl.u32 %v949, 16
        %v965 = vpack.i.b16 %v964, %v963
        %v969 = vpack.i.b16 %v948, %v914
        %v971 = vshrl.u32 %v914, 16
        %v972 = vshrl.u32 %v948, 16
        %v973 = vpack.i.b16 %v972, %v971
        %v977 = vpack.i.b16 %v950, %v916
        %v979 = vshrl.u32 %v916, 16
        %v980 = vshrl.u32 %v950, 16
        %v981 = vpack.i.b16 %v980, %v979
        %v983 = vcombine.low %v953, %v969
        %v985 = vunpack.c.l.s4 1983009808
        %v986 = vunpack.c.0.s8 %v985
        %v987 = vlaneseq
        %v988 = vshrl.u32 %v987, 7
        %v989 = vsub.s32 %v986, %v988
        %v990 = vrot.slane %v983, %v989
        %v991 = vcombine.low %v961, %v977
        %v993 = vunpack.c.l.s4 1983009808
        %v994 = vunpack.c.0.s8 %v993
        %v995 = vlaneseq
        %v996 = vshrl.u32 %v995, 7
        %v997 = vsub.s32 %v994, %v996
        %v998 = vrot.slane %v991, %v997
        %v999 = vcombine.low %v990, %v998
        %v1001 = vunpack.c.l.s4 1934713408
        %v1002 = vunpack.c.0.s8 %v1001
        %v1003 = vlaneseq
        %v1004 = vshrl.u32 %v1003, 7
        %v1005 = vsub.s32 %v1002, %v1004
        %v1006 = vrot.slane %v999, %v1005
        %v1007 = vcombine.high %v1006, 0
        %v1008 = vcombine.low %v957, %v973
        %v1010 = vunpack.c.l.s4 1983009808
        %v1011 = vunpack.c.0.s8 %v1010
        %v1012 = vlaneseq
        %v1013 = vshrl.u32 %v1012, 7
        %v1014 = vsub.s32 %v1011, %v1013
        %v1015 = vrot.slane %v1008, %v1014
        %v1016 = vcombine.low %v965, %v981
        %v1018 = vunpack.c.l.s4 1983009808
        %v1019 = vunpack.c.0.s8 %v1018
        %v1020 = vlaneseq
        %v1021 = vshrl.u32 %v1020, 7
        %v1022 = vsub.s32 %v1019, %v1021
        %v1023 = vrot.slane %v1016, %v1022
        %v1024 = vcombine.low %v1015, %v1023
        %v1026 = vunpack.c.l.s4 1934713408
        %v1027 = vunpack.c.0.s8 %v1026
        %v1028 = vlaneseq
        %v1029 = vshrl.u32 %v1028, 7
        %v1030 = vsub.s32 %v1027, %v1029
        %v1031 = vrot.slane %v1024, %v1030
        %v1032 = vcombine.high %v1031, 0
        %v1035 = vpack.i.b16 %v1031, %v1006
        %v1036 = vshrl.u32 %v1006, 16
        %v1037 = vshrl.u32 %v1031, 16
        %v1038 = vpack.i.b16 %v1037, %v1036
        %v1041 = vpack.i.b16 %v1032, %v1007
        %v1042 = vshrl.u32 %v1007, 16
        %v1043 = vshrl.u32 %v1032, 16
        %v1044 = vpack.i.b16 %v1043, %v1042
        %v1045 = vlaneseq
        %v1046 = vand.u32 %v1045, 127
        %v1047 = vlaneseq
        %v1048 = vshrl.u32 %v1047, 7
        %vm1049 = vcmask 64512
        %v1051 = vsel %vm1049, %v695, 0
        %v1054 = vsel %vm1049, %v865, 0
        %1056 = vmatprep.subr.bf16.mxu0 0
        %1057 = vmatpush1.bf16.xpose.msra.mxu0 0
        %1058 = vmatprep.subr.bf16.mxu0 0
        %1059 = vmatpush1.bf16.xpose.msra.mxu0 0
        %1060 = vmatprep.subr.bf16.mxu0 0
        %1061 = vmatpush1.bf16.xpose.msra.mxu0 0
        %1062 = vmatprep.subr.bf16.mxu0 0
        %1063 = vmatpush1.bf16.xpose.msra.mxu0 0
        %1064 = vmatprep.subr.bf16.mxu0 0
        %1065 = vmatpush1.bf16.xpose.msra.mxu0 0
        %1066 = vmatprep.subr.bf16.mxu0 0
        %1067 = vmatpush1.bf16.xpose.msra.mxu0 0
        %1068 = vmatprep.subr.bf16.mxu0 0
        %1069 = vmatpush1.bf16.xpose.msra.mxu0 0
        %1070 = vmatprep.subr.bf16.mxu0 0
        %1071 = vmatpush1.bf16.xpose.msra.mxu0 %v1054
        %1072 = vmatprep.subr.bf16.mxu0 0
        %1073 = vmatpush2.bf16.xpose.msra.mxu0 0
        %1074 = vmatprep.subr.bf16.mxu0 0
        %1075 = vmatpush2.bf16.xpose.msra.mxu0 0
        %1076 = vmatprep.subr.bf16.mxu0 0
        %1077 = vmatpush2.bf16.xpose.msra.mxu0 0
        %1078 = vmatprep.subr.bf16.mxu0 0
        %1079 = vmatpush2.bf16.xpose.msra.mxu0 0
        %1080 = vmatprep.subr.bf16.mxu0 0
        %1081 = vmatpush2.bf16.xpose.msra.mxu0 0
        %1082 = vmatprep.subr.bf16.mxu0 0
        %1083 = vmatpush2.bf16.xpose.msra.mxu0 0
        %1084 = vmatprep.subr.bf16.mxu0 0
        %1085 = vmatpush2.bf16.xpose.msra.mxu0 0
        %1086 = vmatprep.subr.bf16.mxu0 0
        %1087 = vmatpush2.bf16.xpose.msra.mxu0 0
        %1088 = vmatprep.mubr.bf16.mxu0 0
        %1089 = vmatmul.mubr.bf16.gmra.mxu0 %v1051
        %v1090 = vpop.f32.mrf.mxu0
        %v1091 = vadd.f32 0.0, %v1090
        %v1092 = vpop.f32.mrf.mxu0
        %v1093 = vpop.f32.mrf.mxu0
        %v1094 = vpop.f32.mrf.mxu0
        %1095 = vdwg.mxu0
        %v1097 = vsel %vm1049, %v698, 0
        %v1100 = vsel %vm1049, %v868, 0
        %1102 = vmatprep.subr.bf16.mxu0 0
        %1103 = vmatpush1.bf16.xpose.msra.mxu0 0
        %1104 = vmatprep.subr.bf16.mxu0 0
        %1105 = vmatpush1.bf16.xpose.msra.mxu0 0
        %1106 = vmatprep.subr.bf16.mxu0 0
        %1107 = vmatpush1.bf16.xpose.msra.mxu0 0
        %1108 = vmatprep.subr.bf16.mxu0 0
        %1109 = vmatpush1.bf16.xpose.msra.mxu0 0
        %1110 = vmatprep.subr.bf16.mxu0 0
        %1111 = vmatpush1.bf16.xpose.msra.mxu0 0
        %1112 = vmatprep.subr.bf16.mxu0 0
        %1113 = vmatpush1.bf16.xpose.msra.mxu0 0
        %1114 = vmatprep.subr.bf16.mxu0 0
        %1115 = vmatpush1.bf16.xpose.msra.mxu0 0
        %1116 = vmatprep.subr.bf16.mxu0 0
        %1117 = vmatpush1.bf16.xpose.msra.mxu0 %v1100
        %1118 = vmatprep.subr.bf16.mxu0 0
        %1119 = vmatpush2.bf16.xpose.msra.mxu0 0
        %1120 = vmatprep.subr.bf16.mxu0 0
        %1121 = vmatpush2.bf16.xpose.msra.mxu0 0
        %1122 = vmatprep.subr.bf16.mxu0 0
        %1123 = vmatpush2.bf16.xpose.msra.mxu0 0
        %1124 = vmatprep.subr.bf16.mxu0 0
        %1125 = vmatpush2.bf16.xpose.msra.mxu0 0
        %1126 = vmatprep.subr.bf16.mxu0 0
        %1127 = vmatpush2.bf16.xpose.msra.mxu0 0
        %1128 = vmatprep.subr.bf16.mxu0 0
        %1129 = vmatpush2.bf16.xpose.msra.mxu0 0
        %1130 = vmatprep.subr.bf16.mxu0 0
        %1131 = vmatpush2.bf16.xpose.msra.mxu0 0
        %1132 = vmatprep.subr.bf16.mxu0 0
        %1133 = vmatpush2.bf16.xpose.msra.mxu0 0
        %1134 = vmatprep.mubr.bf16.mxu0 0
        %1135 = vmatmul.mubr.bf16.gmra.mxu0 %v1097
        %v1136 = vpop.f32.mrf.mxu0
        %v1137 = vadd.f32 0.0, %v1136
        %v1138 = vpop.f32.mrf.mxu0
        %v1139 = vpop.f32.mrf.mxu0
        %v1140 = vpop.f32.mrf.mxu0
        %1141 = vdwg.mxu0
        %v1143 = vsel %vm1049, %v701, 0
        %v1146 = vsel %vm1049, %v871, 0
        %1148 = vmatprep.subr.bf16.mxu0 0
        %1149 = vmatpush1.bf16.xpose.msra.mxu0 0
        %1150 = vmatprep.subr.bf16.mxu0 0
        %1151 = vmatpush1.bf16.xpose.msra.mxu0 0
        %1152 = vmatprep.subr.bf16.mxu0 0
        %1153 = vmatpush1.bf16.xpose.msra.mxu0 0
        %1154 = vmatprep.subr.bf16.mxu0 0
        %1155 = vmatpush1.bf16.xpose.msra.mxu0 0
        %1156 = vmatprep.subr.bf16.mxu0 0
        %1157 = vmatpush1.bf16.xpose.msra.mxu0 0
        %1158 = vmatprep.subr.bf16.mxu0 0
        %1159 = vmatpush1.bf16.xpose.msra.mxu0 0
        %1160 = vmatprep.subr.bf16.mxu0 0
        %1161 = vmatpush1.bf16.xpose.msra.mxu0 0
        %1162 = vmatprep.subr.bf16.mxu0 0
        %1163 = vmatpush1.bf16.xpose.msra.mxu0 %v1146
        %1164 = vmatprep.subr.bf16.mxu0 0
        %1165 = vmatpush2.bf16.xpose.msra.mxu0 0
        %1166 = vmatprep.subr.bf16.mxu0 0
        %1167 = vmatpush2.bf16.xpose.msra.mxu0 0
        %1168 = vmatprep.subr.bf16.mxu0 0
        %1169 = vmatpush2.bf16.xpose.msra.mxu0 0
        %1170 = vmatprep.subr.bf16.mxu0 0
        %1171 = vmatpush2.bf16.xpose.msra.mxu0 0
        %1172 = vmatprep.subr.bf16.mxu0 0
        %1173 = vmatpush2.bf16.xpose.msra.mxu0 0
        %1174 = vmatprep.subr.bf16.mxu0 0
        %1175 = vmatpush2.bf16.xpose.msra.mxu0 0
        %1176 = vmatprep.subr.bf16.mxu0 0
        %1177 = vmatpush2.bf16.xpose.msra.mxu0 0
        %1178 = vmatprep.subr.bf16.mxu0 0
        %1179 = vmatpush2.bf16.xpose.msra.mxu0 0
        %1180 = vmatprep.mubr.bf16.mxu0 0
        %1181 = vmatmul.mubr.bf16.gmra.mxu0 %v1143
        %v1182 = vpop.f32.mrf.mxu0
        %v1183 = vadd.f32 0.0, %v1182
        %v1184 = vpop.f32.mrf.mxu0
        %v1185 = vpop.f32.mrf.mxu0
        %v1186 = vpop.f32.mrf.mxu0
        %1187 = vdwg.mxu0
        %v1189 = vsel %vm1049, %v704, 0
        %v1192 = vsel %vm1049, %v874, 0
        %1194 = vmatprep.subr.bf16.mxu0 0
        %1195 = vmatpush1.bf16.xpose.msra.mxu0 0
        %1196 = vmatprep.subr.bf16.mxu0 0
        %1197 = vmatpush1.bf16.xpose.msra.mxu0 0
        %1198 = vmatprep.subr.bf16.mxu0 0
        %1199 = vmatpush1.bf16.xpose.msra.mxu0 0
        %1200 = vmatprep.subr.bf16.mxu0 0
        %1201 = vmatpush1.bf16.xpose.msra.mxu0 0
        %1202 = vmatprep.subr.bf16.mxu0 0
        %1203 = vmatpush1.bf16.xpose.msra.mxu0 0
        %1204 = vmatprep.subr.bf16.mxu0 0
        %1205 = vmatpush1.bf16.xpose.msra.mxu0 0
        %1206 = vmatprep.subr.bf16.mxu0 0
        %1207 = vmatpush1.bf16.xpose.msra.mxu0 0
        %1208 = vmatprep.subr.bf16.mxu0 0
        %1209 = vmatpush1.bf16.xpose.msra.mxu0 %v1192
        %1210 = vmatprep.subr.bf16.mxu0 0
        %1211 = vmatpush2.bf16.xpose.msra.mxu0 0
        %1212 = vmatprep.subr.bf16.mxu0 0
        %1213 = vmatpush2.bf16.xpose.msra.mxu0 0
        %1214 = vmatprep.subr.bf16.mxu0 0
        %1215 = vmatpush2.bf16.xpose.msra.mxu0 0
        %1216 = vmatprep.subr.bf16.mxu0 0
        %1217 = vmatpush2.bf16.xpose.msra.mxu0 0
        %1218 = vmatprep.subr.bf16.mxu0 0
        %1219 = vmatpush2.bf16.xpose.msra.mxu0 0
        %1220 = vmatprep.subr.bf16.mxu0 0
        %1221 = vmatpush2.bf16.xpose.msra.mxu0 0
        %1222 = vmatprep.subr.bf16.mxu0 0
        %1223 = vmatpush2.bf16.xpose.msra.mxu0 0
        %1224 = vmatprep.subr.bf16.mxu0 0
        %1225 = vmatpush2.bf16.xpose.msra.mxu0 0
        %1226 = vmatprep.mubr.bf16.mxu0 0
        %1227 = vmatmul.mubr.bf16.gmra.mxu0 %v1189
        %v1228 = vpop.f32.mrf.mxu0
        %v1229 = vadd.f32 0.0, %v1228
        %v1230 = vpop.f32.mrf.mxu0
        %v1231 = vpop.f32.mrf.mxu0
        %v1232 = vpop.f32.mrf.mxu0
        %1233 = vdwg.mxu0
        %vm1234 = vcmp.le.s32.totalorder %v1046, %v1048
        %v1235 = vsel %vm1234, 1, 0
        %vm1236 = vcmp.eq.s32.totalorder %v1235, 1
        %v1237 = vsel %vm1236, %v1091, -1e+30
        %v1238 = vsel %vm1236, %v1137, -1e+30
        %v1239 = vsel %vm1236, %v1183, -1e+30
        %v1240 = vsel %vm1236, %v1229, -1e+30
        %v1241 = vsel %vm1049, %v1237, -inf
        %1242 = vmax.xlane.f32.xlu0 %v1241
        %v1243 = vpop.xlane.xlu0 %1242
        %v1244 = vsel %vm1049, %v1238, -inf
        %1245 = vmax.xlane.f32.xlu0 %v1244
        %v1246 = vpop.xlane.xlu0 %1245
        %v1247 = vsel %vm1049, %v1239, -inf
        %1248 = vmax.xlane.f32.xlu0 %v1247
        %v1249 = vpop.xlane.xlu0 %1248
        %v1250 = vsel %vm1049, %v1240, -inf
        %1251 = vmax.xlane.f32.xlu0 %v1250
        %v1252 = vpop.xlane.xlu0 %1251
        %v1253 = vsub.f32 %v1237, %v1243
        %v1254 = vsub.f32 %v1238, %v1246
        %v1255 = vsub.f32 %v1239, %v1249
        %v1256 = vsub.f32 %v1240, %v1252
        %v1257 = vmul.f32 %v1253, 1.442695
        %v1258 = vpow.pop %v1257
        %v1259 = vmul.f32 %v1254, 1.442695
        %v1260 = vpow.pop %v1259
        %v1261 = vmul.f32 %v1255, 1.442695
        %v1262 = vpow.pop %v1261
        %v1263 = vmul.f32 %v1256, 1.442695
        %v1264 = vpow.pop %v1263
        %v1265 = vsel %vm1049, %v1258, 0.0
        %1266 = vadd.xlane.f32.xlu0 %v1265
        %v1267 = vpop.xlane.xlu0 %1266
        %v1268 = vsel %vm1049, %v1260, 0.0
        %1269 = vadd.xlane.f32.xlu0 %v1268
        %v1270 = vpop.xlane.xlu0 %1269
        %v1271 = vsel %vm1049, %v1262, 0.0
        %1272 = vadd.xlane.f32.xlu0 %v1271
        %v1273 = vpop.xlane.xlu0 %1272
        %v1274 = vsel %vm1049, %v1264, 0.0
        %1275 = vadd.xlane.f32.xlu0 %v1274
        %v1276 = vpop.xlane.xlu0 %1275
        %v1277 = vpack.c.bf16 %v1258, %v1258
        %v1278 = vpack.c.bf16 %v1260, %v1260
        %v1279 = vpack.c.bf16 %v1262, %v1262
        %v1280 = vpack.c.bf16 %v1264, %v1264
        %v1282 = vsel %vm1049, %v1277, 0
        %vm1284 = vcmask 1043456
        %v1286 = vsel %vm1284, %v1035, 0
        %1288 = vmatprep.subr.bf16.mxu0 0
        %1289 = vmatpush1.bf16.msra.mxu0 0
        %1290 = vmatprep.subr.bf16.mxu0 0
        %1291 = vmatpush1.bf16.msra.mxu0 0
        %1292 = vmatprep.subr.bf16.mxu0 0
        %1293 = vmatpush1.bf16.msra.mxu0 0
        %1294 = vmatprep.subr.bf16.mxu0 0
        %1295 = vmatpush1.bf16.msra.mxu0 0
        %1296 = vmatprep.subr.bf16.mxu0 0
        %1297 = vmatpush1.bf16.msra.mxu0 0
        %1298 = vmatprep.subr.bf16.mxu0 0
        %1299 = vmatpush1.bf16.msra.mxu0 0
        %1300 = vmatprep.subr.bf16.mxu0 0
        %1301 = vmatpush1.bf16.msra.mxu0 0
        %1302 = vmatprep.subr.bf16.mxu0 0
        %1303 = vmatpush1.bf16.msra.mxu0 %v1286
        %1304 = vmatprep.subr.bf16.mxu0 0
        %1305 = vmatpush2.bf16.msra.mxu0 0
        %1306 = vmatprep.subr.bf16.mxu0 0
        %1307 = vmatpush2.bf16.msra.mxu0 0
        %1308 = vmatprep.subr.bf16.mxu0 0
        %1309 = vmatpush2.bf16.msra.mxu0 0
        %1310 = vmatprep.subr.bf16.mxu0 0
        %1311 = vmatpush2.bf16.msra.mxu0 0
        %1312 = vmatprep.subr.bf16.mxu0 0
        %1313 = vmatpush2.bf16.msra.mxu0 0
        %1314 = vmatprep.subr.bf16.mxu0 0
        %1315 = vmatpush2.bf16.msra.mxu0 0
        %1316 = vmatprep.subr.bf16.mxu0 0
        %1317 = vmatpush2.bf16.msra.mxu0 0
        %1318 = vmatprep.subr.bf16.mxu0 0
        %1319 = vmatpush2.bf16.msra.mxu0 0
        %1320 = vmatprep.mubr.bf16.mxu0 0
        %1321 = vmatmul.mubr.bf16.gmra.mxu0 %v1282
        %v1322 = vpop.f32.mrf.mxu0
        %v1323 = vadd.f32 0.0, %v1322
        %v1324 = vpop.f32.mrf.mxu0
        %v1325 = vpop.f32.mrf.mxu0
        %v1326 = vpop.f32.mrf.mxu0
        %1327 = vdwg.mxu0
        %v1329 = vsel %vm1049, %v1278, 0
        %v1332 = vsel %vm1284, %v1038, 0
        %1334 = vmatprep.subr.bf16.mxu0 0
        %1335 = vmatpush1.bf16.msra.mxu0 0
        %1336 = vmatprep.subr.bf16.mxu0 0
        %1337 = vmatpush1.bf16.msra.mxu0 0
        %1338 = vmatprep.subr.bf16.mxu0 0
        %1339 = vmatpush1.bf16.msra.mxu0 0
        %1340 = vmatprep.subr.bf16.mxu0 0
        %1341 = vmatpush1.bf16.msra.mxu0 0
        %1342 = vmatprep.subr.bf16.mxu0 0
        %1343 = vmatpush1.bf16.msra.mxu0 0
        %1344 = vmatprep.subr.bf16.mxu0 0
        %1345 = vmatpush1.bf16.msra.mxu0 0
        %1346 = vmatprep.subr.bf16.mxu0 0
        %1347 = vmatpush1.bf16.msra.mxu0 0
        %1348 = vmatprep.subr.bf16.mxu0 0
        %1349 = vmatpush1.bf16.msra.mxu0 %v1332
        %1350 = vmatprep.subr.bf16.mxu0 0
        %1351 = vmatpush2.bf16.msra.mxu0 0
        %1352 = vmatprep.subr.bf16.mxu0 0
        %1353 = vmatpush2.bf16.msra.mxu0 0
        %1354 = vmatprep.subr.bf16.mxu0 0
        %1355 = vmatpush2.bf16.msra.mxu0 0
        %1356 = vmatprep.subr.bf16.mxu0 0
        %1357 = vmatpush2.bf16.msra.mxu0 0
        %1358 = vmatprep.subr.bf16.mxu0 0
        %1359 = vmatpush2.bf16.msra.mxu0 0
        %1360 = vmatprep.subr.bf16.mxu0 0
        %1361 = vmatpush2.bf16.msra.mxu0 0
        %1362 = vmatprep.subr.bf16.mxu0 0
        %1363 = vmatpush2.bf16.msra.mxu0 0
        %1364 = vmatprep.subr.bf16.mxu0 0
        %1365 = vmatpush2.bf16.msra.mxu0 0
        %1366 = vmatprep.mubr.bf16.mxu0 0
        %1367 = vmatmul.mubr.bf16.gmra.mxu0 %v1329
        %v1368 = vpop.f32.mrf.mxu0
        %v1369 = vadd.f32 0.0, %v1368
        %v1370 = vpop.f32.mrf.mxu0
        %v1371 = vpop.f32.mrf.mxu0
        %v1372 = vpop.f32.mrf.mxu0
        %1373 = vdwg.mxu0
        %v1375 = vsel %vm1049, %v1279, 0
        %v1378 = vsel %vm1284, %v1041, 0
        %1380 = vmatprep.subr.bf16.mxu0 0
        %1381 = vmatpush1.bf16.msra.mxu0 0
        %1382 = vmatprep.subr.bf16.mxu0 0
        %1383 = vmatpush1.bf16.msra.mxu0 0
        %1384 = vmatprep.subr.bf16.mxu0 0
        %1385 = vmatpush1.bf16.msra.mxu0 0
        %1386 = vmatprep.subr.bf16.mxu0 0
        %1387 = vmatpush1.bf16.msra.mxu0 0
        %1388 = vmatprep.subr.bf16.mxu0 0
        %1389 = vmatpush1.bf16.msra.mxu0 0
        %1390 = vmatprep.subr.bf16.mxu0 0
        %1391 = vmatpush1.bf16.msra.mxu0 0
        %1392 = vmatprep.subr.bf16.mxu0 0
        %1393 = vmatpush1.bf16.msra.mxu0 0
        %1394 = vmatprep.subr.bf16.mxu0 0
        %1395 = vmatpush1.bf16.msra.mxu0 %v1378
        %1396 = vmatprep.subr.bf16.mxu0 0
        %1397 = vmatpush2.bf16.msra.mxu0 0
        %1398 = vmatprep.subr.bf16.mxu0 0
        %1399 = vmatpush2.bf16.msra.mxu0 0
        %1400 = vmatprep.subr.bf16.mxu0 0
        %1401 = vmatpush2.bf16.msra.mxu0 0
        %1402 = vmatprep.subr.bf16.mxu0 0
        %1403 = vmatpush2.bf16.msra.mxu0 0
        %1404 = vmatprep.subr.bf16.mxu0 0
        %1405 = vmatpush2.bf16.msra.mxu0 0
        %1406 = vmatprep.subr.bf16.mxu0 0
        %1407 = vmatpush2.bf16.msra.mxu0 0
        %1408 = vmatprep.subr.bf16.mxu0 0
        %1409 = vmatpush2.bf16.msra.mxu0 0
        %1410 = vmatprep.subr.bf16.mxu0 0
        %1411 = vmatpush2.bf16.msra.mxu0 0
        %1412 = vmatprep.mubr.bf16.mxu0 0
        %1413 = vmatmul.mubr.bf16.gmra.mxu0 %v1375
        %v1414 = vpop.f32.mrf.mxu0
        %v1415 = vadd.f32 0.0, %v1414
        %v1416 = vpop.f32.mrf.mxu0
        %v1417 = vpop.f32.mrf.mxu0
        %v1418 = vpop.f32.mrf.mxu0
        %1419 = vdwg.mxu0
        %v1421 = vsel %vm1049, %v1280, 0
        %v1424 = vsel %vm1284, %v1044, 0
        %1426 = vmatprep.subr.bf16.mxu0 0
        %1427 = vmatpush1.bf16.msra.mxu0 0
        %1428 = vmatprep.subr.bf16.mxu0 0
        %1429 = vmatpush1.bf16.msra.mxu0 0
        %1430 = vmatprep.subr.bf16.mxu0 0
        %1431 = vmatpush1.bf16.msra.mxu0 0
        %1432 = vmatprep.subr.bf16.mxu0 0
        %1433 = vmatpush1.bf16.msra.mxu0 0
        %1434 = vmatprep.subr.bf16.mxu0 0
        %1435 = vmatpush1.bf16.msra.mxu0 0
        %1436 = vmatprep.subr.bf16.mxu0 0
        %1437 = vmatpush1.bf16.msra.mxu0 0
        %1438 = vmatprep.subr.bf16.mxu0 0
        %1439 = vmatpush1.bf16.msra.mxu0 0
        %1440 = vmatprep.subr.bf16.mxu0 0
        %1441 = vmatpush1.bf16.msra.mxu0 %v1424
        %1442 = vmatprep.subr.bf16.mxu0 0
        %1443 = vmatpush2.bf16.msra.mxu0 0
        %1444 = vmatprep.subr.bf16.mxu0 0
        %1445 = vmatpush2.bf16.msra.mxu0 0
        %1446 = vmatprep.subr.bf16.mxu0 0
        %1447 = vmatpush2.bf16.msra.mxu0 0
        %1448 = vmatprep.subr.bf16.mxu0 0
        %1449 = vmatpush2.bf16.msra.mxu0 0
        %1450 = vmatprep.subr.bf16.mxu0 0
        %1451 = vmatpush2.bf16.msra.mxu0 0
        %1452 = vmatprep.subr.bf16.mxu0 0
        %1453 = vmatpush2.bf16.msra.mxu0 0
        %1454 = vmatprep.subr.bf16.mxu0 0
        %1455 = vmatpush2.bf16.msra.mxu0 0
        %1456 = vmatprep.subr.bf16.mxu0 0
        %1457 = vmatpush2.bf16.msra.mxu0 0
        %1458 = vmatprep.mubr.bf16.mxu0 0
        %1459 = vmatmul.mubr.bf16.gmra.mxu0 %v1421
        %v1460 = vpop.f32.mrf.mxu0
        %v1461 = vadd.f32 0.0, %v1460
        %v1462 = vpop.f32.mrf.mxu0
        %v1463 = vpop.f32.mrf.mxu0
        %v1464 = vpop.f32.mrf.mxu0
        %1465 = vdwg.mxu0
        %v1466 = vrcp.pop %v1267
        %v1467 = vrcp.pop %v1270
        %v1468 = vrcp.pop %v1273
        %v1469 = vrcp.pop %v1276
        %v1470 = vmul.f32 %v1323, %v1466
        %v1471 = vmul.f32 %v1369, %v1467
        %v1472 = vmul.f32 %v1415, %v1468
        %v1473 = vmul.f32 %v1461, %v1469
        %v1474 = vpack.c.bf16 %v1470, %v1470
        %v1476 = vunpack.c.l.s4 1983009808
        %v1477 = vunpack.c.0.s8 %v1476
        %v1478 = vlaneseq
        %v1479 = vshrl.u32 %v1478, 7
        %v1480 = vsub.s32 %v1477, %v1479
        %v1481 = vrot.slane %v1474, %v1480
        %v1482 = vpack.c.bf16 %v1472, %v1472
        %v1484 = vunpack.c.l.s4 1983009808
        %v1485 = vunpack.c.0.s8 %v1484
        %v1486 = vlaneseq
        %v1487 = vshrl.u32 %v1486, 7
        %v1488 = vsub.s32 %v1485, %v1487
        %v1489 = vrot.slane %v1482, %v1488
        %v1490 = vcombine.low %v1481, %v1489
        %v1491 = vcombine.high %v1481, %v1489
        %v1493 = vunpack.c.l.s4 1934713408
        %v1494 = vunpack.c.0.s8 %v1493
        %v1495 = vlaneseq
        %v1496 = vshrl.u32 %v1495, 7
        %v1497 = vsub.s32 %v1494, %v1496
        %v1498 = vrot.slane %v1490, %v1497
        %v1500 = vunpack.c.l.s4 1934713408
        %v1501 = vunpack.c.0.s8 %v1500
        %v1502 = vlaneseq
        %v1503 = vshrl.u32 %v1502, 7
        %v1504 = vsub.s32 %v1501, %v1503
        %v1505 = vrot.slane %v1491, %v1504
        %v1506 = vcombine.high %v1498, 0
        %v1507 = vcombine.high %v1505, 0
        %v1508 = vpack.c.bf16 %v1471, %v1471
        %v1510 = vunpack.c.l.s4 1983009808
        %v1511 = vunpack.c.0.s8 %v1510
        %v1512 = vlaneseq
        %v1513 = vshrl.u32 %v1512, 7
        %v1514 = vsub.s32 %v1511, %v1513
        %v1515 = vrot.slane %v1508, %v1514
        %v1516 = vpack.c.bf16 %v1473, %v1473
        %v1518 = vunpack.c.l.s4 1983009808
        %v1519 = vunpack.c.0.s8 %v1518
        %v1520 = vlaneseq
        %v1521 = vshrl.u32 %v1520, 7
        %v1522 = vsub.s32 %v1519, %v1521
        %v1523 = vrot.slane %v1516, %v1522
        %v1524 = vcombine.low %v1515, %v1523
        %v1525 = vcombine.high %v1515, %v1523
        %v1527 = vunpack.c.l.s4 1934713408
        %v1528 = vunpack.c.0.s8 %v1527
        %v1529 = vlaneseq
        %v1530 = vshrl.u32 %v1529, 7
        %v1531 = vsub.s32 %v1528, %v1530
        %v1532 = vrot.slane %v1524, %v1531
        %v1534 = vunpack.c.l.s4 1934713408
        %v1535 = vunpack.c.0.s8 %v1534
        %v1536 = vlaneseq
        %v1537 = vshrl.u32 %v1536, 7
        %v1538 = vsub.s32 %v1535, %v1537
        %v1539 = vrot.slane %v1525, %v1538
        %v1540 = vcombine.high %v1532, 0
        %v1541 = vcombine.high %v1539, 0
        %v1544 = vpack.i.b16 %v1532, %v1498
        %v1546 = vshrl.u32 %v1498, 16
        %v1547 = vshrl.u32 %v1532, 16
        %v1548 = vpack.i.b16 %v1547, %v1546
        %v1552 = vpack.i.b16 %v1540, %v1506
        %v1554 = vshrl.u32 %v1506, 16
        %v1555 = vshrl.u32 %v1540, 16
        %v1556 = vpack.i.b16 %v1555, %v1554
        %v1560 = vpack.i.b16 %v1539, %v1505
        %v1562 = vshrl.u32 %v1505, 16
        %v1563 = vshrl.u32 %v1539, 16
        %v1564 = vpack.i.b16 %v1563, %v1562
        %v1568 = vpack.i.b16 %v1541, %v1507
        %v1570 = vshrl.u32 %v1507, 16
        %v1571 = vshrl.u32 %v1541, 16
        %v1572 = vpack.i.b16 %v1571, %v1570
        %v1574 = vcombine.low %v1544, %v1560
        %v1576 = vunpack.c.l.s4 1983009808
        %v1577 = vunpack.c.0.s8 %v1576
        %v1578 = vlaneseq
        %v1579 = vshrl.u32 %v1578, 7
        %v1580 = vsub.s32 %v1577, %v1579
        %v1581 = vrot.slane %v1574, %v1580
        %v1582 = vcombine.low %v1552, %v1568
        %v1584 = vunpack.c.l.s4 1983009808
        %v1585 = vunpack.c.0.s8 %v1584
        %v1586 = vlaneseq
        %v1587 = vshrl.u32 %v1586, 7
        %v1588 = vsub.s32 %v1585, %v1587
        %v1589 = vrot.slane %v1582, %v1588
        %v1590 = vcombine.low %v1581, %v1589
        %v1592 = vunpack.c.l.s4 1934713408
        %v1593 = vunpack.c.0.s8 %v1592
        %v1594 = vlaneseq
        %v1595 = vshrl.u32 %v1594, 7
        %v1596 = vsub.s32 %v1593, %v1595
        %v1597 = vrot.slane %v1590, %v1596
        %v1598 = vcombine.high %v1597, 0
        %v1599 = vcombine.low %v1548, %v1564
        %v1601 = vunpack.c.l.s4 1983009808
        %v1602 = vunpack.c.0.s8 %v1601
        %v1603 = vlaneseq
        %v1604 = vshrl.u32 %v1603, 7
        %v1605 = vsub.s32 %v1602, %v1604
        %v1606 = vrot.slane %v1599, %v1605
        %v1607 = vcombine.low %v1556, %v1572
        %v1609 = vunpack.c.l.s4 1983009808
        %v1610 = vunpack.c.0.s8 %v1609
        %v1611 = vlaneseq
        %v1612 = vshrl.u32 %v1611, 7
        %v1613 = vsub.s32 %v1610, %v1612
        %v1614 = vrot.slane %v1607, %v1613
        %v1615 = vcombine.low %v1606, %v1614
        %v1617 = vunpack.c.l.s4 1934713408
        %v1618 = vunpack.c.0.s8 %v1617
        %v1619 = vlaneseq
        %v1620 = vshrl.u32 %v1619, 7
        %v1621 = vsub.s32 %v1618, %v1620
        %v1622 = vrot.slane %v1615, %v1621
        %v1623 = vcombine.high %v1622, 0
        %v1626 = vpack.i.b16 %v1622, %v1597
        %v1627 = vshrl.u32 %v1597, 16
        %v1628 = vshrl.u32 %v1622, 16
        %v1629 = vpack.i.b16 %v1628, %v1627
        %v1632 = vpack.i.b16 %v1623, %v1598
        %v1633 = vshrl.u32 %v1598, 16
        %v1634 = vshrl.u32 %v1623, 16
        %v1635 = vpack.i.b16 %v1634, %v1633
        %1636 = vrot.lane.b32.xlu0 %v1629, 8
        %v1637 = vpop.permute.xlu0 %1636
        %1638 = vrot.lane.b32.xlu0 %v1632, 16
        %v1639 = vpop.permute.xlu0 %1638
        %1640 = vrot.lane.b32.xlu0 %v1635, 24
        %v1641 = vpop.permute.xlu0 %1640
        %v1644 = vsel %vm1049, %v1626, %v1637
        %vm1645 = vcmask 130048
        %v1647 = vsel %vm1645, %v1644, %v1639
        %vm1648 = vcmask 195584
        %v1650 = vsel %vm1648, %v1647, %v1641
        %v1651 = vld [vmem:[%s5] sm:$0xf]
        %v1652 = vld [vmem:[%s5 + $0x4] sm:$0xf]
        %v1653 = vld [vmem:[%s5 + $0x8] sm:$0xf]
        %v1654 = vld [vmem:[%s5 + $0xc] sm:$0xf]
        %v1655 = vld [vmem:[%s6] sm:$0x1]
        %v1657 = vlaneseq
        %v1658 = vshrl.u32 %v1657, 7
        %v1659 = vsub.s32 0, %v1658
        %v1660 = vrot.slane %v1655, %v1659
        %v1666 = vunpack.c.l.b16 %v1651
        %v1667 = vunpack.c.l.b16 %v1652
        %v1668 = vunpack.c.l.b16 %v1653
        %v1669 = vunpack.c.l.b16 %v1654
        %v1670 = vpack.c.b16 %v1667, %v1666
        %v1671 = vpack.c.b16 %v1669, %v1668
        %v1674 = vsel %vm440, %v1650, 0
        %1676 = vmatprep.subr.bf16.mxu0 0
        %1677 = vmatpush1.bf16.msra.mxu0 0
        %1678 = vmatprep.subr.bf16.mxu0 0
        %1679 = vmatpush1.bf16.msra.mxu0 0
        %1680 = vmatprep.subr.bf16.mxu0 0
        %1681 = vmatpush1.bf16.msra.mxu0 0
        %1682 = vmatprep.subr.bf16.mxu0 0
        %1683 = vmatpush1.bf16.msra.mxu0 0
        %1684 = vmatprep.subr.bf16.mxu0 0
        %1685 = vmatpush1.bf16.msra.mxu0 0
        %1686 = vmatprep.subr.bf16.mxu0 0
        %1687 = vmatpush1.bf16.msra.mxu0 0
        %1688 = vmatprep.subr.bf16.mxu0 0
        %1689 = vmatpush1.bf16.msra.mxu0 %v1671
        %1690 = vmatprep.subr.bf16.mxu0 0
        %1691 = vmatpush1.bf16.msra.mxu0 %v1670
        %1692 = vmatprep.subr.bf16.mxu0 0
        %1693 = vmatpush2.bf16.msra.mxu0 0
        %1694 = vmatprep.subr.bf16.mxu0 0
        %1695 = vmatpush2.bf16.msra.mxu0 0
        %1696 = vmatprep.subr.bf16.mxu0 0
        %1697 = vmatpush2.bf16.msra.mxu0 0
        %1698 = vmatprep.subr.bf16.mxu0 0
        %1699 = vmatpush2.bf16.msra.mxu0 0
        %1700 = vmatprep.subr.bf16.mxu0 0
        %1701 = vmatpush2.bf16.msra.mxu0 0
        %1702 = vmatprep.subr.bf16.mxu0 0
        %1703 = vmatpush2.bf16.msra.mxu0 0
        %1704 = vmatprep.subr.bf16.mxu0 0
        %1705 = vmatpush2.bf16.msra.mxu0 0
        %1706 = vmatprep.subr.bf16.mxu0 0
        %1707 = vmatpush2.bf16.msra.mxu0 0
        %1708 = vmatprep.mubr.bf16.mxu0 0
        %1709 = vmatmul.mubr.bf16.gmra.mxu0 %v1674
        %v1710 = vpop.f32.mrf.mxu0
        %v1711 = vadd.f32 %v1660, %v1710
        %v1712 = vpop.f32.mrf.mxu0
        %v1713 = vpop.f32.mrf.mxu0
        %v1714 = vpop.f32.mrf.mxu0
        %1715 = vdwg.mxu0
        %v1716 = vadd.f32 %v437, %v1711
        %v1717 = vld [vmem:[%s7] sm:$0x1]
        %v1718 = vld [vmem:[%s8] sm:$0x1]
        %v1719 = vsel %vm440, %v1716, 0.0
        %1720 = vadd.xlane.f32.xlu0 %v1719
        %v1721 = vpop.xlane.xlu0 %1720
        %v1722 = vmul.f32 %v1721, %v444
        %v1723 = vsub.f32 %v1716, %v1722
        %v1724 = vmul.f32 %v1723, %v1723
        %v1725 = vsel %vm440, %v1724, 0.0
        %1726 = vadd.xlane.f32.xlu0 %v1725
        %v1727 = vpop.xlane.xlu0 %1726
        %v1728 = vmul.f32 %v1727, %v444
        %v1729 = vadd.f32 %v1728, 1e-05
        %v1730 = vrsqrt.pop %v1729
        %v1731 = vmul.f32 %v1723, %v1730
        %v1733 = vlaneseq
        %v1734 = vshrl.u32 %v1733, 7
        %v1735 = vsub.s32 0, %v1734
        %v1736 = vrot.slane %v1717, %v1735
        %v1738 = vmul.f32 %v1731, %v1736
        %v1740 = vlaneseq
        %v1741 = vshrl.u32 %v1740, 7
        %v1742 = vsub.s32 0, %v1741
        %v1743 = vrot.slane %v1718, %v1742
        %v1745 = vadd.f32 %v1738, %v1743
        %v1746 = vpack.c.bf16 %v1745, %v1745
        %v1747 = vld [vmem:[%s9] sm:$0xf]
        %v1748 = vld [vmem:[%s9 + $0x4] sm:$0xf]
        %v1749 = vld [vmem:[%s9 + $0x8] sm:$0xf]
        %v1750 = vld [vmem:[%s9 + $0xc] sm:$0xf]
        %v1751 = vld [vmem:[%s10] sm:$0x1]
        %v1753 = vlaneseq
        %v1754 = vshrl.u32 %v1753, 7
        %v1755 = vsub.s32 0, %v1754
        %v1756 = vrot.slane %v1751, %v1755
        %v1762 = vunpack.c.l.b16 %v1747
        %v1763 = vunpack.c.l.b16 %v1748
        %v1764 = vunpack.c.l.b16 %v1749
        %v1765 = vunpack.c.l.b16 %v1750
        %v1766 = vpack.c.b16 %v1763, %v1762
        %v1767 = vpack.c.b16 %v1765, %v1764
        %v1771 = vsel %vm440, %v1746, 0
        %1773 = vmatprep.subr.bf16.mxu0 0
        %1774 = vmatpush1.bf16.msra.mxu0 0
        %1775 = vmatprep.subr.bf16.mxu0 0
        %1776 = vmatpush1.bf16.msra.mxu0 0
        %1777 = vmatprep.subr.bf16.mxu0 0
        %1778 = vmatpush1.bf16.msra.mxu0 0
        %1779 = vmatprep.subr.bf16.mxu0 0
        %1780 = vmatpush1.bf16.msra.mxu0 0
        %1781 = vmatprep.subr.bf16.mxu0 0
        %1782 = vmatpush1.bf16.msra.mxu0 0
        %1783 = vmatprep.subr.bf16.mxu0 0
        %1784 = vmatpush1.bf16.msra.mxu0 0
        %1785 = vmatprep.subr.bf16.mxu0 0
        %1786 = vmatpush1.bf16.msra.mxu0 %v1767
        %1787 = vmatprep.subr.bf16.mxu0 0
        %1788 = vmatpush1.bf16.msra.mxu0 %v1766
        %1789 = vmatprep.subr.bf16.mxu0 0
        %1790 = vmatpush2.bf16.msra.mxu0 0
        %1791 = vmatprep.subr.bf16.mxu0 0
        %1792 = vmatpush2.bf16.msra.mxu0 0
        %1793 = vmatprep.subr.bf16.mxu0 0
        %1794 = vmatpush2.bf16.msra.mxu0 0
        %1795 = vmatprep.subr.bf16.mxu0 0
        %1796 = vmatpush2.bf16.msra.mxu0 0
        %1797 = vmatprep.subr.bf16.mxu0 0
        %1798 = vmatpush2.bf16.msra.mxu0 0
        %1799 = vmatprep.subr.bf16.mxu0 0
        %1800 = vmatpush2.bf16.msra.mxu0 0
        %1801 = vmatprep.subr.bf16.mxu0 0
        %1802 = vmatpush2.bf16.msra.mxu0 0
        %1803 = vmatprep.subr.bf16.mxu0 0
        %1804 = vmatpush2.bf16.msra.mxu0 0
        %1805 = vmatprep.mubr.bf16.mxu0 0
        %1806 = vmatmul.mubr.bf16.gmra.mxu0 %v1771
        %v1807 = vpop.f32.mrf.mxu0
        %v1808 = vadd.f32 %v1756, %v1807
        %v1809 = vpop.f32.mrf.mxu0
        %v1810 = vpop.f32.mrf.mxu0
        %v1811 = vpop.f32.mrf.mxu0
        %1812 = vdwg.mxu0
        %v1813 = vmul.f32 %v1808, 0.5
        %v1814 = vmul.f32 %v1808, 0.044715
        %v1815 = vmul.f32 %v1814, %v1808
        %v1816 = vmul.f32 %v1815, %v1808
        %v1817 = vadd.f32 %v1808, %v1816
        %v1818 = vmul.f32 %v1817, 0.7978846
        %v1819 = vtanh.pop %v1818
        %v1820 = vadd.f32 %v1819, 1.0
        %v1821 = vmul.f32 %v1813, %v1820
        %v1822 = vpack.c.bf16 %v1821, %v1821
        %v1823 = vld [vmem:[%s11] sm:$0xf]
        %v1824 = vld [vmem:[%s11 + $0x4] sm:$0xf]
        %v1825 = vld [vmem:[%s11 + $0x8] sm:$0xf]
        %v1826 = vld [vmem:[%s11 + $0xc] sm:$0xf]
        %v1827 = vld [vmem:[%s11 + $0x10] sm:$0xf]
        %v1828 = vld [vmem:[%s11 + $0x14] sm:$0xf]
        %v1829 = vld [vmem:[%s11 + $0x18] sm:$0xf]
        %v1830 = vld [vmem:[%s11 + $0x1c] sm:$0xf]
        %v1831 = vld [vmem:[%s11 + $0x20] sm:$0xf]
        %v1832 = vld [vmem:[%s11 + $0x24] sm:$0xf]
        %v1833 = vld [vmem:[%s11 + $0x28] sm:$0xf]
        %v1834 = vld [vmem:[%s11 + $0x2c] sm:$0xf]
        %v1835 = vld [vmem:[%s11 + $0x30] sm:$0xf]
        %v1836 = vld [vmem:[%s11 + $0x34] sm:$0xf]
        %v1837 = vld [vmem:[%s11 + $0x38] sm:$0xf]
        %v1838 = vld [vmem:[%s11 + $0x3c] sm:$0xf]
        %v1839 = vld [vmem:[%s12] sm:$0x1]
        %v1841 = vlaneseq
        %v1842 = vshrl.u32 %v1841, 7
        %v1843 = vsub.s32 0, %v1842
        %v1844 = vrot.slane %v1839, %v1843
        %v1862 = vunpack.c.l.b16 %v1823
        %v1863 = vunpack.c.l.b16 %v1824
        %v1864 = vunpack.c.l.b16 %v1825
        %v1865 = vunpack.c.l.b16 %v1826
        %v1866 = vunpack.c.l.b16 %v1827
        %v1867 = vunpack.c.l.b16 %v1828
        %v1868 = vunpack.c.l.b16 %v1829
        %v1869 = vunpack.c.l.b16 %v1830
        %v1870 = vunpack.c.l.b16 %v1831
        %v1871 = vunpack.c.l.b16 %v1832
        %v1872 = vunpack.c.l.b16 %v1833
        %v1873 = vunpack.c.l.b16 %v1834
        %v1874 = vunpack.c.l.b16 %v1835
        %v1875 = vunpack.c.l.b16 %v1836
        %v1876 = vunpack.c.l.b16 %v1837
        %v1877 = vunpack.c.l.b16 %v1838
        %v1878 = vpack.c.b16 %v1863, %v1862
        %v1879 = vpack.c.b16 %v1865, %v1864
        %v1880 = vpack.c.b16 %v1867, %v1866
        %v1881 = vpack.c.b16 %v1869, %v1868
        %v1882 = vpack.c.b16 %v1871, %v1870
        %v1883 = vpack.c.b16 %v1873, %v1872
        %v1884 = vpack.c.b16 %v1875, %v1874
        %v1885 = vpack.c.b16 %v1877, %v1876
        %1894 = vmatprep.subr.bf16.mxu0 0
        %1895 = vmatpush1.bf16.msra.mxu0 %v1885
        %1896 = vmatprep.subr.bf16.mxu0 0
        %1897 = vmatpush1.bf16.msra.mxu0 %v1884
        %1898 = vmatprep.subr.bf16.mxu0 0
        %1899 = vmatpush1.bf16.msra.mxu0 %v1883
        %1900 = vmatprep.subr.bf16.mxu0 0
        %1901 = vmatpush1.bf16.msra.mxu0 %v1882
        %1902 = vmatprep.subr.bf16.mxu0 0
        %1903 = vmatpush1.bf16.msra.mxu0 %v1881
        %1904 = vmatprep.subr.bf16.mxu0 0
        %1905 = vmatpush1.bf16.msra.mxu0 %v1880
        %1906 = vmatprep.subr.bf16.mxu0 0
        %1907 = vmatpush1.bf16.msra.mxu0 %v1879
        %1908 = vmatprep.subr.bf16.mxu0 0
        %1909 = vmatpush1.bf16.msra.mxu0 %v1878
        %1910 = vmatprep.subr.bf16.mxu0 0
        %1911 = vmatpush2.bf16.msra.mxu0 0
        %1912 = vmatprep.subr.bf16.mxu0 0
        %1913 = vmatpush2.bf16.msra.mxu0 0
        %1914 = vmatprep.subr.bf16.mxu0 0
        %1915 = vmatpush2.bf16.msra.mxu0 0
        %1916 = vmatprep.subr.bf16.mxu0 0
        %1917 = vmatpush2.bf16.msra.mxu0 0
        %1918 = vmatprep.subr.bf16.mxu0 0
        %1919 = vmatpush2.bf16.msra.mxu0 0
        %1920 = vmatprep.subr.bf16.mxu0 0
        %1921 = vmatpush2.bf16.msra.mxu0 0
        %1922 = vmatprep.subr.bf16.mxu0 0
        %1923 = vmatpush2.bf16.msra.mxu0 0
        %1924 = vmatprep.subr.bf16.mxu0 0
        %1925 = vmatpush2.bf16.msra.mxu0 0
        %1926 = vmatprep.mubr.bf16.mxu0 0
        %1927 = vmatmul.mubr.bf16.gmra.mxu0 %v1822
        %v1928 = vpop.f32.mrf.mxu0
        %v1929 = vadd.f32 %v1844, %v1928
        %v1930 = vpop.f32.mrf.mxu0
        %v1931 = vpop.f32.mrf.mxu0
        %v1932 = vpop.f32.mrf.mxu0
        %1933 = vdwg.mxu0
        %v1934 = vadd.f32 %v1716, %v1929
        %1935 = vst.msk [vmem:[%s431] sm:$0xff] %vm440, %v1934
        %s1936 = sand.u32 %s313, 1
        %s1937 = scalar_lea.sflag [#allocation3], %s1936
        %s1938 = sand.u32 %s313, 1
        %s1939 = smul.addr %s1938, 8
        %s1940 = scalar_lea.vmem [#allocation2], %s1939
        // Predicated region
        $region73: #{tpu_custom_call.1} parent=71 // pred_check
          %p1941 = pneg %p323
        $region74: #{tpu_custom_call.1} parent=71 // pred_check_branch
          %1943 = sbr.rel (%p1941) target = $region76
        $region75: #{tpu_custom_call.1} parent=71 // pred_region
          %s1945 = ssub.s32 128, 128
          %1946 = vsyncadd %s1937, %s1945
          %s1947 = smul.addr %s27, 128
          %s1948 = scalar_lea.hbm %s13, %s1947
          %s1950 = sshll.u32 %s1940, 4
          %s1951 = int_to_ptr.vmem [resolvable:$true] %s1950
          %1953 = dma.vmem_to_hbm [thread:$0]  %s1951, 128, %s1948, %s1937
        $region76: #{tpu_custom_call.1} parent=71 // pred_fallthru
          _
      $region72: #{tpu_custom_call.1} parent=5 // pred_fallthru
        _
      %p1954 = scmp.le.s32.totalorder 2, %s22
      // Predicated region
      $region77: #{tpu_custom_call.1} parent=5 // pred_check
        %p1955 = pneg %p1954
      $region78: #{tpu_custom_call.1} parent=5 // pred_check_branch
        %1957 = sbr.rel (%p1955) target = $region80
      $region79: #{tpu_custom_call.1} parent=5 // pred_region
        %s1958 = ssub.s32 %s22, 2
        // Predicated region
        $region81: #{tpu_custom_call.1} parent=79 // pred_check
          %p1959 = pneg %p329
        $region82: #{tpu_custom_call.1} parent=79 // pred_check_branch
          %1961 = sbr.rel (%p1959) target = $region84
        $region83: #{tpu_custom_call.1} parent=79 // pred_region
          %s1962 = sand.u32 %s314, 1
          %s1963 = scalar_lea.sflag [#allocation3], %s1962
          %s1964 = sand.u32 %s314, 1
          %s1965 = smul.addr %s1964, 8
          %s1966 = scalar_lea.vmem [#allocation2], %s1965
          %1967 = dma.done %s1963, 128
        $region84: #{tpu_custom_call.1} parent=79 // pred_fallthru
          _
      $region80: #{tpu_custom_call.1} parent=5 // pred_fallthru
        _
    $region6: #{tpu_custom_call.1} parent=1 // loop_footer
      %s26 = sadd.s32 1, %s22
    $region7: #{tpu_custom_call.1} parent=1 // loop_footer_branch
      %21 = sbr.rel target = $region3
    $region8: #{tpu_custom_call.1} parent=1 // loop_exit
      _
    %1968 = vsyncpa [#allocation3], 1
    %s1969 = scalar_lea.sflag [#allocation3], 1
    %1970 = vsyncpa %s1969, 1

</llo_original>
